<compile_context>
chip_gen: v6e
topology: v6e:2x2x1
jax: 0.10.0
libtpu: 0.0.40
codegen_flags: <defaults>
</compile_context>

<pallas_src>
import math
from functools import partial

import jax
import jax.numpy as jnp
from jax.experimental import pallas as pl
from jax.experimental.pallas import tpu as pltpu

EPS = 1e-5          # nn.BatchNorm2d default eps
LANES = 128


def _round_up(x, m):
    return (x + m - 1) // m * m


def _vmem_limit_bytes():
    """Per-generation VMEM limit (~3/4 of physical): ~48 MiB v7x, ~96 MiB v5e/v6e."""
    try:
        cap = pltpu.get_tpu_info().vmem_capacity_bytes
        return int(min(cap * 3 // 4, 100 * 1024 * 1024))
    except Exception:
        return 48 * 1024 * 1024     # safe on every generation


def _compiler_params(vmem_limit):
    # Both grid axes (image, row-tile) are independent -> parallel (megacore on v7x).
    try:
        return pltpu.CompilerParams(
            dimension_semantics=("parallel", "parallel"),
            vmem_limit_bytes=int(vmem_limit),
        )
    except Exception:               # API drift: fall back to compiler defaults
        return None


def _choose_tile_h(N, H, Wp, k_dim, n_taps, cout_pad, budget):
    """Largest row-tile height TH (divisor of H) whose per-step VMEM fits `budget`,
    preferring a smaller TH when that yields >= 8 grid steps with >= 64-row tiles,
    so DMA/compute double-buffering and both v7x TensorCores stay busy."""
    def fits(th):
        rows, rows_in = th * Wp, (th + 2) * Wp + 8
        p1 = (2 * rows_in * k_dim * 2              # input tile, bf16, double-buffered
              + 2 * n_taps * k_dim * cout_pad * 2  # weights, bf16, double-buffered
              + 2 * rows * cout_pad * 2            # yw out, bf16, double-buffered
              + rows * cout_pad * 4                # f32 accumulator scratch
              + 2 * rows * 4                       # valid-column mask
              + 4 * cout_pad * 4 * 2)              # partial-stat outputs
        p2 = 2 * rows * cout_pad * 2 + 2 * rows * cout_pad * 2   # phase-2 in/out bf16
        return max(p1, p2) <= budget

    divisors = [d for d in range(1, H + 1) if H % d == 0]
    fitting = [d for d in divisors if fits(d)] or [1]
    preferred = [d for d in fitting if N * (H // d) >= 8 and d * Wp >= 64]
    return max(preferred) if preferred else max(fitting)


def _conv_stats_kernel(x_ref, w_ref, m_ref, yw_ref, s_ref, css_ref, acc_ref,
                       *, offsets, rows, inv_cnt):
    """One row tile: direct shifted-slice conv on the MXU + per-tile BN stats.

    x_ref  : (1, rows_in, K)        bf16  flattened padded row tile (2-row halo)
    w_ref  : (n_taps, K, Cout_pad)  bf16  one (K, Cout) matrix per (merged) tap
    m_ref  : (rows, 1)              f32   1.0 for valid wide columns, else 0.0
    yw_ref : (1, rows, Cout_pad)    bf16  conv output tile in "wide" row layout
    s_ref  : (1, 1, Cout_pad)       f32   per-tile per-channel sum
    css_ref: (1, 1, Cout_pad)       f32   per-tile centered sum of squares
    acc_ref: (rows, Cout_pad)       f32   VMEM scratch accumulator
    """
    # Shifted slices are read straight from the ref (no full-tile value preload),
    # accumulated into the f32 VMEM scratch (no chain of full-tile value adds).
    for i, off in enumerate(offsets):
        part = jnp.dot(x_ref[0, off:off + rows, :], w_ref[i],
                       preferred_element_type=jnp.float32)
        if i == 0:
            acc_ref[...] = part
        else:
            acc_ref[...] += part

    m = m_ref[...]
    acc = acc_ref[...] * m                       # zero wrap-around ("garbage") columns
    # bf16 store of the wide tile happens AFTER the f32 stats are sourced from acc.
    yw_ref[0] = acc.astype(yw_ref.dtype)

    s = jnp.sum(acc, axis=0, keepdims=True)                      # per-channel sum
    mean_t = s * inv_cnt                                         # per-tile mean
    css = jnp.sum(jnp.square((acc - mean_t) * m), axis=0, keepdims=True)
    s_ref[0] = s
    css_ref[0] = css


def _bn_relu_kernel(yw_ref, scale_ref, shift_ref, o_ref):
    """Lane-dense normalize + ReLU on one row tile: out = max(y*scale + shift, 0)."""
    y = yw_ref[0].astype(jnp.float32)
    o_ref[0] = jnp.maximum(y * scale_ref[...] + shift_ref[...], 0.0).astype(o_ref.dtype)


@jax.jit
def conv_block_forward(x_nchw, w_oihw, bias, gamma, beta):
    """ConvBlock forward. x: (N, Cin, H, W) f32 -> (N, Cout, H, W) f32.

    `bias` is accepted for API parity but unused: BatchNorm subtracts the batch
    mean immediately after the conv, so a per-channel bias cancels exactly.
    """
    del bias
    N, Cin, H, W = x_nchw.shape
    Cout = w_oihw.shape[0]
    Wp = W + 2
    cin_pad = _round_up(Cin, 8)
    cout_pad = _round_up(Cout, LANES)

    # Small Cin: merge the 3 horizontal taps into the contraction dim so each MXU
    # matmul contracts over K = 3*cin_pad instead of cin_pad (v5e threshold: Cin<128).
    merge_kw = cin_pad < 128
    n_taps = 3 if merge_kw else 9
    k_dim = 3 * cin_pad if merge_kw else cin_pad

    vmem_limit = _vmem_limit_bytes()
    TH = _choose_tile_h(N, H, Wp, k_dim, n_taps, cout_pad, int(vmem_limit * 0.8))
    nT = H // TH
    R = TH * Wp                                           # wide rows per tile
    rows_in = (TH + 2) * Wp + (0 if merge_kw else 8)      # +8 slack for 9-tap offsets

    # ---- layout prep (pure XLA glue) ----------------------------------------
    x_nhwc = jnp.transpose(x_nchw, (0, 2, 3, 1))
    xp = jnp.pad(x_nhwc, ((0, 0), (1, 1), (1, 1), (0, cin_pad - Cin))).astype(jnp.bfloat16)
    w_t = jnp.transpose(w_oihw, (2, 3, 1, 0))             # (3, 3, Cin, Cout)
    w_t = jnp.pad(w_t, ((0, 0), (0, 0), (0, cin_pad - Cin), (0, cout_pad - Cout)))

    if merge_kw:
        # Channel-concat of the 3 horizontal shifts (done here rather than as a
        # lane-concat of sub-128-wide slabs inside the kernel, which would be
        # relayout-bound; costs <= 3x of a *small* bf16 input in HBM).
        shifted = [xp] + [jnp.pad(xp[:, :, k:, :], ((0, 0), (0, 0), (0, k), (0, 0)))
                          for k in (1, 2)]
        x_src = jnp.concatenate(shifted, axis=-1)          # (N, Hp, Wp, 3*cin_pad)
        w_taps = w_t.reshape(3, 3 * cin_pad, cout_pad).astype(jnp.bfloat16)
        offsets = tuple(kh * Wp for kh in range(3))
    else:
        x_src = xp
        w_taps = w_t.reshape(9, cin_pad, cout_pad).astype(jnp.bfloat16)
        offsets = tuple(kh * Wp + kw for kh in range(3) for kw in range(3))

    # Row tiles of TH image rows with a 2-row halo, duplicated in the wrapper so
    # every BlockSpec stays a plain block-indexed (non-overlapping) window.
    tiles = [x_src[:, t * TH: t * TH + TH + 2] for t in range(nT)]
    x_tiled = jnp.stack(tiles, axis=1).reshape(N * nT, (TH + 2) * Wp, k_dim)
    if rows_in > (TH + 2) * Wp:
        x_tiled = jnp.pad(x_tiled, ((0, 0), (0, rows_in - (TH + 2) * Wp), (0, 0)))

    # Valid-column mask for the wide row layout (column j of an image row valid iff j<W).
    col = jnp.arange(R, dtype=jnp.int32) % Wp
    valid_mask = (col < W).astype(jnp.float32).reshape(R, 1)

    cparams = _compiler_params(vmem_limit)

    # ---- phase 1: conv (bf16 MXU, f32 acc) + per-tile partial BN stats -------
    kernel1 = partial(_conv_stats_kernel, offsets=offsets, rows=R,
                      inv_cnt=1.0 / float(TH * W))
    yw, psum, pcss = pl.pallas_call(
        kernel1,
        grid=(N, nT),
        in_specs=[
            pl.BlockSpec((1, rows_in, k_dim), lambda n, t: (n * nT + t, 0, 0)),
            pl.BlockSpec((n_taps, k_dim, cout_pad), lambda n, t: (0, 0, 0)),
            pl.BlockSpec((R, 1), lambda n, t: (0, 0)),
        ],
        out_specs=(
            pl.BlockSpec((1, R, cout_pad), lambda n, t: (n * nT + t, 0, 0)),
            pl.BlockSpec((1, 1, cout_pad), lambda n, t: (n * nT + t, 0, 0)),
            pl.BlockSpec((1, 1, cout_pad), lambda n, t: (n * nT + t, 0, 0)),
        ),
        out_shape=(
            jax.ShapeDtypeStruct((N * nT, R, cout_pad), jnp.bfloat16),
            jax.ShapeDtypeStruct((N * nT, 1, cout_pad), jnp.float32),
            jax.ShapeDtypeStruct((N * nT, 1, cout_pad), jnp.float32),
        ),
        scratch_shapes=[pltpu.VMEM((R, cout_pad), jnp.float32)],
        compiler_params=cparams,
    )(x_tiled, w_taps, valid_mask)

    # ---- combine per-tile stats (Chan parallel-variance; no E[y^2]-mean^2) ----
    cnt_t = float(TH * W)
    total = float(N * H * W)
    s = psum[:, 0, :]                                     # (N*nT, Cout_pad)
    css = pcss[:, 0, :]
    mean_t = s / cnt_t
    mean = jnp.sum(s, axis=0) / total
    var = (jnp.sum(css, axis=0)
           + cnt_t * jnp.sum(jnp.square(mean_t - mean[None, :]), axis=0)) / total
    var = jnp.maximum(var, 0.0)                           # biased batch variance
    gamma_p = jnp.pad(gamma.astype(jnp.float32), (0, cout_pad - Cout))
    beta_p = jnp.pad(beta.astype(jnp.float32), (0, cout_pad - Cout))
    inv = jax.lax.rsqrt(var + EPS)
    scale = (gamma_p * inv).reshape(1, cout_pad)
    shift = (beta_p - mean * gamma_p * inv).reshape(1, cout_pad)

    # ---- phase 2: normalize + ReLU (lane-dense, row-tiled, bf16 out) ---------
    out_wide = pl.pallas_call(
        _bn_relu_kernel,
        grid=(N, nT),
        in_specs=[
            pl.BlockSpec((1, R, cout_pad), lambda n, t: (n * nT + t, 0, 0)),
            pl.BlockSpec((1, cout_pad), lambda n, t: (0, 0)),
            pl.BlockSpec((1, cout_pad), lambda n, t: (0, 0)),
        ],
        out_specs=pl.BlockSpec((1, R, cout_pad), lambda n, t: (n * nT + t, 0, 0)),
        out_shape=jax.ShapeDtypeStruct((N * nT, R, cout_pad), jnp.bfloat16),
        compiler_params=cparams,
    )(yw, scale, shift)

    # Epilogue: drop wide-layout garbage columns + channel padding, back to NCHW f32.
    out = out_wide.reshape(N, H, Wp, cout_pad)[:, :, :W, :Cout]
    return jnp.transpose(out.astype(jnp.float32), (0, 3, 1, 2))


def conv_block_reference(x_nchw, w_oihw, bias, gamma, beta):
    """Pure-JAX (f32, HIGHEST precision) reference for correctness checking."""
    Cout = w_oihw.shape[0]
    x_nhwc = jnp.transpose(x_nchw, (0, 2, 3, 1))
    w_hwio = jnp.transpose(w_oihw, (2, 3, 1, 0))
    y = jax.lax.conv_general_dilated(
        x_nhwc, w_hwio, window_strides=(1, 1), padding=((1, 1), (1, 1)),
        dimension_numbers=("NHWC", "HWIO", "NHWC"),
        precision=jax.lax.Precision.HIGHEST)
    y = y + bias.reshape(1, 1, 1, Cout)
    mean = jnp.mean(y, axis=(0, 1, 2), keepdims=True)
    var = jnp.mean((y - mean) ** 2, axis=(0, 1, 2), keepdims=True)
    y = (y - mean) / jnp.sqrt(var + EPS)
    y = y * gamma.reshape(1, 1, 1, Cout) + beta.reshape(1, 1, 1, Cout)
    y = jnp.maximum(y, 0.0)
    return jnp.transpose(y, (0, 3, 1, 2))


if __name__ == "__main__":
    def run_case(case_key, N, Cin, Cout, H, W):
        kx, kw, kb = jax.random.split(case_key, 3)
        x = jax.random.normal(kx, (N, Cin, H, W), dtype=jnp.float32)
        std = math.sqrt(2.0 / (3 * 3 * Cout))                 # reset_param init
        w = jax.random.normal(kw, (Cout, Cin, 3, 3), dtype=jnp.float32) * std
        b = jax.random.normal(kb, (Cout,), dtype=jnp.float32) * 0.01
        gamma = jnp.ones((Cout,), dtype=jnp.float32)          # BatchNorm2d defaults
        beta = jnp.zeros((Cout,), dtype=jnp.float32)

        out = jax.block_until_ready(conv_block_forward(x, w, b, gamma, beta))
        assert out.shape == (N, Cout, H, W)

        ref = conv_block_reference(x, w, b, gamma, beta)
        max_err = float(jnp.max(jnp.abs(out - ref)))
        mean_err = float(jnp.mean(jnp.abs(out - ref)))
        # bf16 matmul inputs + bf16 wide/output intermediates on ~N(0,1) outputs.
        assert max_err < 0.15, f"max abs err {max_err}"
        assert mean_err < 0.02, f"mean abs err {mean_err}"

    key = jax.random.PRNGKey(0)
    k1, k2 = jax.random.split(key)
    run_case(k1, N=2, Cin=4, Cout=8, H=16, W=16)     # kw-merged small-Cin path, nT>1 halos
    run_case(k2, N=2, Cin=128, Cout=8, H=16, W=16)   # 9-tap large-Cin path
    print("KERNEL_OK")
</pallas_src>

<mosaic_0001>
module attributes {stable_mosaic.version = 11 : i64} {
  func.func @_conv_stats_kernel(%arg0: i32, %arg1: i32, %arg2: memref<1x108x24xbf16, #tpu.memory_space<vmem>>, %arg3: memref<3x24x128xbf16, #tpu.memory_space<vmem>>, %arg4: memref<72x1xf32, #tpu.memory_space<vmem>>, %arg5: memref<1x72x128xbf16, #tpu.memory_space<vmem>>, %arg6: memref<1x1x128xf32, #tpu.memory_space<vmem>>, %arg7: memref<1x1x128xf32, #tpu.memory_space<vmem>>, %arg8: memref<72x128xf32, #tpu.memory_space<vmem>>) attributes {dimension_semantics = [#tpu.dimension_semantics<parallel>, #tpu.dimension_semantics<parallel>], iteration_bounds = array<i64: 2, 4>, scalar_prefetch = 0 : i64, scratch_operands = 1 : i64, tpu.core_type = #tpu.core_type<tc>, window_params = [{transform_indices = @transform_0, window_bounds = array<i64: 1, 108, 24>}, {pipeline_mode = #tpu.pipeline_mode<synchronous>, transform_indices = @transform_1, window_bounds = array<i64: 3, 24, 128>}, {pipeline_mode = #tpu.pipeline_mode<synchronous>, transform_indices = @transform_2, window_bounds = array<i64: 72, 1>}, {transform_indices = @transform_3, window_bounds = array<i64: 1, 72, 128>}, {transform_indices = @transform_4, window_bounds = array<i64: 1, 1, 128>}, {transform_indices = @transform_5, window_bounds = array<i64: 1, 1, 128>}]} {
    %c0 = arith.constant 0 : index
    %c0_0 = arith.constant 0 : index
    %c0_1 = arith.constant 0 : index
    %0 = vector.load %arg2[%c0, %c0_0, %c0_1] : memref<1x108x24xbf16, #tpu.memory_space<vmem>>, vector<1x72x24xbf16>
    %1 = vector.shape_cast %0 : vector<1x72x24xbf16> to vector<72x24xbf16>
    %c0_2 = arith.constant 0 : index
    %c0_3 = arith.constant 0 : index
    %c0_4 = arith.constant 0 : index
    %2 = vector.load %arg3[%c0_2, %c0_3, %c0_4] : memref<3x24x128xbf16, #tpu.memory_space<vmem>>, vector<1x24x128xbf16>
    %3 = vector.shape_cast %2 : vector<1x24x128xbf16> to vector<24x128xbf16>
    %cst = arith.constant dense<0.000000e+00> : vector<72x128xf32>
    %4 = tpu.matmul %1, %3, %cst {dimension_numbers = #tpu.dot_dimension_numbers<[1], [0], [0], [1], [0, 0, 1, 1], [], []>} : vector<72x24xbf16>, vector<24x128xbf16>, vector<72x128xf32> -> vector<72x128xf32>
    %c0_5 = arith.constant 0 : index
    %c0_6 = arith.constant 0 : index
    %5 = vector.load %arg8[%c0_5, %c0_6] : memref<72x128xf32, #tpu.memory_space<vmem>>, vector<72x128xf32>
    tpu.vector_store %arg8[%c0_5, %c0_6], %4 {strides = array<i32>} : memref<72x128xf32, #tpu.memory_space<vmem>>, vector<72x128xf32>,
    %c0_7 = arith.constant 0 : index
    %c18 = arith.constant 18 : index
    %c0_8 = arith.constant 0 : index
    %6 = vector.load %arg2[%c0_7, %c18, %c0_8] : memref<1x108x24xbf16, #tpu.memory_space<vmem>>, vector<1x72x24xbf16>
    %7 = vector.shape_cast %6 : vector<1x72x24xbf16> to vector<72x24xbf16>
    %c1 = arith.constant 1 : index
    %c0_9 = arith.constant 0 : index
    %c0_10 = arith.constant 0 : index
    %8 = vector.load %arg3[%c1, %c0_9, %c0_10] : memref<3x24x128xbf16, #tpu.memory_space<vmem>>, vector<1x24x128xbf16>
    %9 = vector.shape_cast %8 : vector<1x24x128xbf16> to vector<24x128xbf16>
    %cst_11 = arith.constant dense<0.000000e+00> : vector<72x128xf32>
    %10 = tpu.matmul %7, %9, %cst_11 {dimension_numbers = #tpu.dot_dimension_numbers<[1], [0], [0], [1], [0, 0, 1, 1], [], []>} : vector<72x24xbf16>, vector<24x128xbf16>, vector<72x128xf32> -> vector<72x128xf32>
    %c0_12 = arith.constant 0 : index
    %c0_13 = arith.constant 0 : index
    %11 = vector.load %arg8[%c0_12, %c0_13] : memref<72x128xf32, #tpu.memory_space<vmem>>, vector<72x128xf32>
    %12 = arith.addf %11, %10 : vector<72x128xf32>
    %c0_14 = arith.constant 0 : index
    %c0_15 = arith.constant 0 : index
    %13 = vector.load %arg8[%c0_14, %c0_15] : memref<72x128xf32, #tpu.memory_space<vmem>>, vector<72x128xf32>
    tpu.vector_store %arg8[%c0_14, %c0_15], %12 {strides = array<i32>} : memref<72x128xf32, #tpu.memory_space<vmem>>, vector<72x128xf32>,
    %c0_16 = arith.constant 0 : index
    %c36 = arith.constant 36 : index
    %c0_17 = arith.constant 0 : index
    %14 = vector.load %arg2[%c0_16, %c36, %c0_17] : memref<1x108x24xbf16, #tpu.memory_space<vmem>>, vector<1x72x24xbf16>
    %15 = vector.shape_cast %14 : vector<1x72x24xbf16> to vector<72x24xbf16>
    %c2 = arith.constant 2 : index
    %c0_18 = arith.constant 0 : index
    %c0_19 = arith.constant 0 : index
    %16 = vector.load %arg3[%c2, %c0_18, %c0_19] : memref<3x24x128xbf16, #tpu.memory_space<vmem>>, vector<1x24x128xbf16>
    %17 = vector.shape_cast %16 : vector<1x24x128xbf16> to vector<24x128xbf16>
    %cst_20 = arith.constant dense<0.000000e+00> : vector<72x128xf32>
    %18 = tpu.matmul %15, %17, %cst_20 {dimension_numbers = #tpu.dot_dimension_numbers<[1], [0], [0], [1], [0, 0, 1, 1], [], []>} : vector<72x24xbf16>, vector<24x128xbf16>, vector<72x128xf32> -> vector<72x128xf32>
    %c0_21 = arith.constant 0 : index
    %c0_22 = arith.constant 0 : index
    %19 = vector.load %arg8[%c0_21, %c0_22] : memref<72x128xf32, #tpu.memory_space<vmem>>, vector<72x128xf32>
    %20 = arith.addf %19, %18 : vector<72x128xf32>
    %c0_23 = arith.constant 0 : index
    %c0_24 = arith.constant 0 : index
    %21 = vector.load %arg8[%c0_23, %c0_24] : memref<72x128xf32, #tpu.memory_space<vmem>>, vector<72x128xf32>
    tpu.vector_store %arg8[%c0_23, %c0_24], %20 {strides = array<i32>} : memref<72x128xf32, #tpu.memory_space<vmem>>, vector<72x128xf32>,
    %c0_25 = arith.constant 0 : index
    %c0_26 = arith.constant 0 : index
    %22 = vector.load %arg4[%c0_25, %c0_26] : memref<72x1xf32, #tpu.memory_space<vmem>>, vector<72x1xf32>
    %c0_27 = arith.constant 0 : index
    %c0_28 = arith.constant 0 : index
    %23 = vector.load %arg8[%c0_27, %c0_28] : memref<72x128xf32, #tpu.memory_space<vmem>>, vector<72x128xf32>
    %24 = vector.broadcast %22 : vector<72x1xf32> to vector<72x128xf32>
    %25 = arith.mulf %23, %24 : vector<72x128xf32>
    %26 = arith.truncf %25 : vector<72x128xf32> to vector<72x128xbf16>
    %c0_29 = arith.constant 0 : index
    %c0_30 = arith.constant 0 : index
    %c0_31 = arith.constant 0 : index
    %27 = vector.load %arg5[%c0_29, %c0_30, %c0_31] : memref<1x72x128xbf16, #tpu.memory_space<vmem>>, vector<1x72x128xbf16>
    %28 = vector.shape_cast %27 : vector<1x72x128xbf16> to vector<72x128xbf16>
    %29 = vector.shape_cast %26 : vector<72x128xbf16> to vector<1x72x128xbf16>
    tpu.vector_store %arg5[%c0_29, %c0_30, %c0_31], %29 {strides = array<i32>} : memref<1x72x128xbf16, #tpu.memory_space<vmem>>, vector<1x72x128xbf16>,
    %cst_32 = arith.constant dense<0.000000e+00> : vector<128xf32>
    %30 = vector.multi_reduction <add>, %25, %cst_32 [0] : vector<72x128xf32> to vector<128xf32>
    %31 = vector.shape_cast %30 : vector<128xf32> to vector<1x128xf32>
    %cst_33 = arith.constant 1.562500e-02 : f32
    %32 = vector.broadcast %cst_33 : f32 to vector<1x128xf32>
    %33 = arith.mulf %31, %32 : vector<1x128xf32>
    %34 = vector.broadcast %33 : vector<1x128xf32> to vector<72x128xf32>
    %35 = arith.subf %25, %34 : vector<72x128xf32>
    %36 = vector.broadcast %22 : vector<72x1xf32> to vector<72x128xf32>
    %37 = arith.mulf %35, %36 : vector<72x128xf32>
    %38 = arith.mulf %37, %37 : vector<72x128xf32>
    %cst_34 = arith.constant dense<0.000000e+00> : vector<128xf32>
    %39 = vector.multi_reduction <add>, %38, %cst_34 [0] : vector<72x128xf32> to vector<128xf32>
    %40 = vector.shape_cast %39 : vector<128xf32> to vector<1x128xf32>
    %c0_35 = arith.constant 0 : index
    %c0_36 = arith.constant 0 : index
    %c0_37 = arith.constant 0 : index
    %41 = vector.load %arg6[%c0_35, %c0_36, %c0_37] : memref<1x1x128xf32, #tpu.memory_space<vmem>>, vector<1x1x128xf32>
    %42 = vector.shape_cast %41 : vector<1x1x128xf32> to vector<1x128xf32>
    %43 = vector.shape_cast %31 : vector<1x128xf32> to vector<1x1x128xf32>
    tpu.vector_store %arg6[%c0_35, %c0_36, %c0_37], %43 {strides = array<i32>} : memref<1x1x128xf32, #tpu.memory_space<vmem>>, vector<1x1x128xf32>,
    %c0_38 = arith.constant 0 : index
    %c0_39 = arith.constant 0 : index
    %c0_40 = arith.constant 0 : index
    %44 = vector.load %arg7[%c0_38, %c0_39, %c0_40] : memref<1x1x128xf32, #tpu.memory_space<vmem>>, vector<1x1x128xf32>
    %45 = vector.shape_cast %44 : vector<1x1x128xf32> to vector<1x128xf32>
    %46 = vector.shape_cast %40 : vector<1x128xf32> to vector<1x1x128xf32>
    tpu.vector_store %arg7[%c0_38, %c0_39, %c0_40], %46 {strides = array<i32>} : memref<1x1x128xf32, #tpu.memory_space<vmem>>, vector<1x1x128xf32>,
    return
  }
  func.func @transform_0(%arg0: i32, %arg1: i32) -> (i32, i32, i32) {
    %c4_i32 = arith.constant 4 : i32
    %0 = arith.muli %arg0, %c4_i32 : i32
    %1 = arith.addi %0, %arg1 : i32
    %c0_i32 = arith.constant 0 : i32
    %c0_i32_0 = arith.constant 0 : i32
    %c0_i32_1 = arith.constant 0 : i32
    return %1, %c0_i32, %c0_i32_0 : i32, i32, i32
  }
  func.func @transform_1(%arg0: i32, %arg1: i32) -> (i32, i32, i32) {
    %c0_i32 = arith.constant 0 : i32
    %c0_i32_0 = arith.constant 0 : i32
    %c0_i32_1 = arith.constant 0 : i32
    %c0_i32_2 = arith.constant 0 : i32
    return %c0_i32, %c0_i32_0, %c0_i32_1 : i32, i32, i32
  }
  func.func @transform_2(%arg0: i32, %arg1: i32) -> (i32, i32) {
    %c0_i32 = arith.constant 0 : i32
    %c0_i32_0 = arith.constant 0 : i32
    %c0_i32_1 = arith.constant 0 : i32
    return %c0_i32, %c0_i32_0 : i32, i32
  }
  func.func @transform_3(%arg0: i32, %arg1: i32) -> (i32, i32, i32) {
    %c4_i32 = arith.constant 4 : i32
    %0 = arith.muli %arg0, %c4_i32 : i32
    %1 = arith.addi %0, %arg1 : i32
    %c0_i32 = arith.constant 0 : i32
    %c0_i32_0 = arith.constant 0 : i32
    %c0_i32_1 = arith.constant 0 : i32
    return %1, %c0_i32, %c0_i32_0 : i32, i32, i32
  }
  func.func @transform_4(%arg0: i32, %arg1: i32) -> (i32, i32, i32) {
    %c4_i32 = arith.constant 4 : i32
    %0 = arith.muli %arg0, %c4_i32 : i32
    %1 = arith.addi %0, %arg1 : i32
    %c0_i32 = arith.constant 0 : i32
    %c0_i32_0 = arith.constant 0 : i32
    %c0_i32_1 = arith.constant 0 : i32
    return %1, %c0_i32, %c0_i32_0 : i32, i32, i32
  }
  func.func @transform_5(%arg0: i32, %arg1: i32) -> (i32, i32, i32) {
    %c4_i32 = arith.constant 4 : i32
    %0 = arith.muli %arg0, %c4_i32 : i32
    %1 = arith.addi %0, %arg1 : i32
    %c0_i32 = arith.constant 0 : i32
    %c0_i32_0 = arith.constant 0 : i32
    %c0_i32_1 = arith.constant 0 : i32
    return %1, %c0_i32, %c0_i32_0 : i32, i32, i32
  }
}

module attributes {stable_mosaic.version = 11 : i64} {
  func.func @_bn_relu_kernel(%arg0: i32, %arg1: i32, %arg2: memref<1x72x128xbf16, #tpu.memory_space<vmem>>, %arg3: memref<1x128xf32, #tpu.memory_space<vmem>>, %arg4: memref<1x128xf32, #tpu.memory_space<vmem>>, %arg5: memref<1x72x128xbf16, #tpu.memory_space<vmem>>) attributes {dimension_semantics = [#tpu.dimension_semantics<parallel>, #tpu.dimension_semantics<parallel>], iteration_bounds = array<i64: 2, 4>, scalar_prefetch = 0 : i64, scratch_operands = 0 : i64, tpu.core_type = #tpu.core_type<tc>, window_params = [{transform_indices = @transform_0, window_bounds = array<i64: 1, 72, 128>}, {pipeline_mode = #tpu.pipeline_mode<synchronous>, transform_indices = @transform_1, window_bounds = array<i64: 1, 128>}, {pipeline_mode = #tpu.pipeline_mode<synchronous>, transform_indices = @transform_2, window_bounds = array<i64: 1, 128>}, {transform_indices = @transform_3, window_bounds = array<i64: 1, 72, 128>}]} {
    %c0 = arith.constant 0 : index
    %c0_0 = arith.constant 0 : index
    %c0_1 = arith.constant 0 : index
    %0 = vector.load %arg2[%c0, %c0_0, %c0_1] : memref<1x72x128xbf16, #tpu.memory_space<vmem>>, vector<1x72x128xbf16>
    %1 = vector.shape_cast %0 : vector<1x72x128xbf16> to vector<72x128xbf16>
    %2 = arith.extf %1 : vector<72x128xbf16> to vector<72x128xf32>
    %c0_2 = arith.constant 0 : index
    %c0_3 = arith.constant 0 : index
    %3 = vector.load %arg3[%c0_2, %c0_3] : memref<1x128xf32, #tpu.memory_space<vmem>>, vector<1x128xf32>
    %4 = vector.broadcast %3 : vector<1x128xf32> to vector<72x128xf32>
    %5 = arith.mulf %2, %4 : vector<72x128xf32>
    %c0_4 = arith.constant 0 : index
    %c0_5 = arith.constant 0 : index
    %6 = vector.load %arg4[%c0_4, %c0_5] : memref<1x128xf32, #tpu.memory_space<vmem>>, vector<1x128xf32>
    %7 = vector.broadcast %6 : vector<1x128xf32> to vector<72x128xf32>
    %8 = arith.addf %5, %7 : vector<72x128xf32>
    %cst = arith.constant 0.000000e+00 : f32
    %9 = vector.broadcast %cst : f32 to vector<72x128xf32>
    %10 = arith.maximumf %8, %9 : vector<72x128xf32>
    %11 = arith.truncf %10 : vector<72x128xf32> to vector<72x128xbf16>
    %c0_6 = arith.constant 0 : index
    %c0_7 = arith.constant 0 : index
    %c0_8 = arith.constant 0 : index
    %12 = vector.load %arg5[%c0_6, %c0_7, %c0_8] : memref<1x72x128xbf16, #tpu.memory_space<vmem>>, vector<1x72x128xbf16>
    %13 = vector.shape_cast %12 : vector<1x72x128xbf16> to vector<72x128xbf16>
    %14 = vector.shape_cast %11 : vector<72x128xbf16> to vector<1x72x128xbf16>
    tpu.vector_store %arg5[%c0_6, %c0_7, %c0_8], %14 {strides = array<i32>} : memref<1x72x128xbf16, #tpu.memory_space<vmem>>, vector<1x72x128xbf16>,
    return
  }
  func.func @transform_0(%arg0: i32, %arg1: i32) -> (i32, i32, i32) {
    %c4_i32 = arith.constant 4 : i32
    %0 = arith.muli %arg0, %c4_i32 : i32
    %1 = arith.addi %0, %arg1 : i32
    %c0_i32 = arith.constant 0 : i32
    %c0_i32_0 = arith.constant 0 : i32
    %c0_i32_1 = arith.constant 0 : i32
    return %1, %c0_i32, %c0_i32_0 : i32, i32, i32
  }
  func.func @transform_1(%arg0: i32, %arg1: i32) -> (i32, i32) {
    %c0_i32 = arith.constant 0 : i32
    %c0_i32_0 = arith.constant 0 : i32
    %c0_i32_1 = arith.constant 0 : i32
    return %c0_i32, %c0_i32_0 : i32, i32
  }
  func.func @transform_2(%arg0: i32, %arg1: i32) -> (i32, i32) {
    %c0_i32 = arith.constant 0 : i32
    %c0_i32_0 = arith.constant 0 : i32
    %c0_i32_1 = arith.constant 0 : i32
    return %c0_i32, %c0_i32_0 : i32, i32
  }
  func.func @transform_3(%arg0: i32, %arg1: i32) -> (i32, i32, i32) {
    %c4_i32 = arith.constant 4 : i32
    %0 = arith.muli %arg0, %c4_i32 : i32
    %1 = arith.addi %0, %arg1 : i32
    %c0_i32 = arith.constant 0 : i32
    %c0_i32_0 = arith.constant 0 : i32
    %c0_i32_1 = arith.constant 0 : i32
    return %1, %c0_i32, %c0_i32_0 : i32, i32, i32
  }
}

</mosaic_0001>

<llo_original>
// kernel: conv_block_forward.3
$region0: #{conv_block_forward.3}
  #allocation0 [shape = 'u32[]', space=smem, size = 0x4, offset = 0x4, fixed_abs, tag = 'smem constant byte address 0x4 - core index']
  #allocation1 [shape = 'u32[144,128]{1,0:T(1,128)}', space=vmem, size = 0x12000, scoped, tag = 'internal scratch']
  %s0 = inlined_call_operand.vmem [shape: bf16[8,72,128], index: 0, kind: input, shape index: {}]
  %s1 = inlined_call_operand.vmem [shape: f32[1,128], index: 1, kind: input, shape index: {}]
  %s2 = inlined_call_operand.vmem [shape: f32[1,128], index: 2, kind: input, shape index: {}]
  %s3 = inlined_call_operand.vmem [shape: bf16[8,72,128], index: 3, kind: output, shape index: {}]
  %s4 = sld [smem:[#allocation0]]
  $region45: #{conv_block_forward.3} parent=0
    _
  %s6 = ssub.s32 1, %s4
  %s7 = scalar_select 0, %s6, %s4
  loop: start=0, step=1, limit=10
  $region2: #{conv_block_forward.3} parent=0 // loop_pre_header
    _
  $region3: #{conv_block_forward.3} parent=0 // loop_header
    %s9 = sphi 0, %s13
    %p10 = scmp.ge.s32.totalorder %s9, 10
    %s16 = sphi 0, %s28
    %s17 = sphi 0, %s24
    %s18 = sphi 0, %s16
    %s19 = sphi 0, %s17
    %s20 = sphi 0, %s18
    %s21 = sphi 0, %s19
    %s35 = sphi 0, %s37
    %s38 = sphi 0, %s35
    %s39 = sphi 0, %s38
    %s55 = sphi 0, %s39
    %s59 = sphi 0, %s59
    %s61 = sphi 0, %s59
    %s62 = sphi 0, %s61
    %s76 = sphi 0, %s62
    %s80 = sphi 0, %s80
    %s82 = sphi 0, %s80
    %s83 = sphi 0, %s82
    %s97 = sphi 0, %s83
    %s107 = sphi 0, %s109
    %s110 = sphi 0, %s107
    %s111 = sphi 0, %s110
    %s127 = sphi 0, %s111
  $region4: #{conv_block_forward.3} parent=0 // loop_header_branch
    %12 = sbr.rel (%p10) target = $region8
  $region5: #{conv_block_forward.3} parent=0 // loop_body
    %s14 = ssub.s32 %s9, 1
    %s15 = ssub.s32 %s9, 2
    %s22 = sadd.s32 1, %s17
    %p23 = scmp.ge.s32.totalorder %s22, 4
    %s24 = scalar_select %p23, 0, %s22
    %s25 = sadd.s32 1, %s16
    %s26 = scalar_select %p23, %s25, %s16
    %p27 = scmp.ge.s32.totalorder %s26, 2
    %s28 = scalar_select %p27, 0, %s26
    %s29 = smul.u32 %s16, 4
    %s30 = sadd.s32 %s29, %s17
    %s31 = smul.u32 %s28, 4
    %s32 = sadd.s32 %s31, %s24
    %s33 = ssub.s32 %s30, %s32
    %p34 = scmp.eq.s32.totalorder %s33, 0
    %s36 = sadd.s32 %s35, 1
    %s37 = scalar_select %p34, %s35, %s36
    %p40 = pneg %p34
    %p41 = scmp.eq.s32.totalorder %s9, 7
    %p42 = por %p40, %p41
    %p43 = scmp.ne.s32.totalorder %s35, %s38
    %p44 = scmp.eq.s32.totalorder %s9, 0
    %p45 = por %p43, %p44
    %p46 = scmp.ne.s32.totalorder %s35, %s38
    %p47 = scmp.eq.s32.totalorder %s14, 7
    %p48 = por %p46, %p47
    %p49 = scmp.ne.s32.totalorder %s38, %s39
    %p50 = scmp.eq.s32.totalorder %s14, 0
    %p51 = por %p49, %p50
    %p52 = scmp.ne.s32.totalorder %s38, %s39
    %p53 = scmp.eq.s32.totalorder %s15, 7
    %p54 = por %p52, %p53
    %p56 = scmp.ne.s32.totalorder %s39, %s55
    %p57 = scmp.eq.s32.totalorder %s15, 0
    %p58 = por %p56, %p57
    %s60 = sadd.s32 %s59, 1
    %p63 = scmp.eq.s32.totalorder %s9, 7
    %p64 = scmp.ne.s32.totalorder %s59, %s61
    %p65 = scmp.eq.s32.totalorder %s9, 0
    %p66 = por %p64, %p65
    %p67 = scmp.ne.s32.totalorder %s59, %s61
    %p68 = scmp.eq.s32.totalorder %s14, 7
    %p69 = por %p67, %p68
    %p70 = scmp.ne.s32.totalorder %s61, %s62
    %p71 = scmp.eq.s32.totalorder %s14, 0
    %p72 = por %p70, %p71
    %p73 = scmp.ne.s32.totalorder %s61, %s62
    %p74 = scmp.eq.s32.totalorder %s15, 7
    %p75 = por %p73, %p74
    %p77 = scmp.ne.s32.totalorder %s62, %s76
    %p78 = scmp.eq.s32.totalorder %s15, 0
    %p79 = por %p77, %p78
    %s81 = sadd.s32 %s80, 1
    %p84 = scmp.eq.s32.totalorder %s9, 7
    %p85 = scmp.ne.s32.totalorder %s80, %s82
    %p86 = scmp.eq.s32.totalorder %s9, 0
    %p87 = por %p85, %p86
    %p88 = scmp.ne.s32.totalorder %s80, %s82
    %p89 = scmp.eq.s32.totalorder %s14, 7
    %p90 = por %p88, %p89
    %p91 = scmp.ne.s32.totalorder %s82, %s83
    %p92 = scmp.eq.s32.totalorder %s14, 0
    %p93 = por %p91, %p92
    %p94 = scmp.ne.s32.totalorder %s82, %s83
    %p95 = scmp.eq.s32.totalorder %s15, 7
    %p96 = por %p94, %p95
    %p98 = scmp.ne.s32.totalorder %s83, %s97
    %p99 = scmp.eq.s32.totalorder %s15, 0
    %p100 = por %p98, %p99
    %s101 = smul.u32 %s16, 4
    %s102 = sadd.s32 %s101, %s17
    %s103 = smul.u32 %s28, 4
    %s104 = sadd.s32 %s103, %s24
    %s105 = ssub.s32 %s102, %s104
    %p106 = scmp.eq.s32.totalorder %s105, 0
    %s108 = sadd.s32 %s107, 1
    %s109 = scalar_select %p106, %s107, %s108
    %p112 = pneg %p106
    %p113 = scmp.eq.s32.totalorder %s9, 7
    %p114 = por %p112, %p113
    %p115 = scmp.ne.s32.totalorder %s107, %s110
    %p116 = scmp.eq.s32.totalorder %s9, 0
    %p117 = por %p115, %p116
    %p118 = scmp.ne.s32.totalorder %s107, %s110
    %p119 = scmp.eq.s32.totalorder %s14, 7
    %p120 = por %p118, %p119
    %p121 = scmp.ne.s32.totalorder %s110, %s111
    %p122 = scmp.eq.s32.totalorder %s14, 0
    %p123 = por %p121, %p122
    %p124 = scmp.ne.s32.totalorder %s110, %s111
    %p125 = scmp.eq.s32.totalorder %s15, 7
    %p126 = por %p124, %p125
    %p128 = scmp.ne.s32.totalorder %s111, %s127
    %p129 = scmp.eq.s32.totalorder %s15, 0
    %p130 = por %p128, %p129
    %p131 = scmp.le.s32.totalorder 1, %s9
    %p132 = scmp.lt.s32.totalorder %s9, 9
    %p133 = pnand %p131, %p132
    %p134 = pneg %p133
    // Predicated region
    $region9: #{conv_block_forward.3} parent=5 // pred_check
      _
    $region10: #{conv_block_forward.3} parent=5 // pred_check_branch
      %136 = sbr.rel (%p133) target = $region12
    $region11: #{conv_block_forward.3} parent=5 // pred_region
      %s137 = ssub.s32 %s9, 1
      // Predicated region
      $region13: #{conv_block_forward.3} parent=11 // pred_check
        %p138 = pneg %p72
      $region14: #{conv_block_forward.3} parent=11 // pred_check_branch
        %140 = sbr.rel (%p138) target = $region16
      $region15: #{conv_block_forward.3} parent=11 // pred_region
        _
      $region16: #{conv_block_forward.3} parent=11 // pred_fallthru
        _
      // Predicated region
      $region17: #{conv_block_forward.3} parent=11 // pred_check
        %p141 = pneg %p93
      $region18: #{conv_block_forward.3} parent=11 // pred_check_branch
        %143 = sbr.rel (%p141) target = $region20
      $region19: #{conv_block_forward.3} parent=11 // pred_region
        _
      $region20: #{conv_block_forward.3} parent=11 // pred_fallthru
        _
    $region12: #{conv_block_forward.3} parent=5 // pred_fallthru
      _
    %p144 = scmp.lt.s32.totalorder %s9, 8
    // Predicated region
    $region21: #{conv_block_forward.3} parent=5 // pred_check
      %p145 = pneg %p144
    $region22: #{conv_block_forward.3} parent=5 // pred_check_branch
      %147 = sbr.rel (%p145) target = $region24
    $region23: #{conv_block_forward.3} parent=5 // pred_region
      // Predicated region
      $region25: #{conv_block_forward.3} parent=23 // pred_check
        %p148 = pneg %p45
      $region26: #{conv_block_forward.3} parent=23 // pred_check_branch
        %150 = sbr.rel (%p148) target = $region28
      $region27: #{conv_block_forward.3} parent=23 // pred_region
        %s151 = smul.u32 %s16, 4
        %s152 = sadd.s32 %s151, %s17
        %p153 = scmp.lt.s32.totalorder %s152, 7
        %s154 = scalar_select %p153, %s152, 7
        %s155 = smul.addr %s154, 9
        %s156 = smul.addr %s155, 4
        %s157 = scalar_lea.vmem %s0, %s156
        %s158 = smul.u32 %s16, 4
        %s159 = sadd.s32 %s158, %s17
      $region28: #{conv_block_forward.3} parent=23 // pred_fallthru
        _
    $region24: #{conv_block_forward.3} parent=5 // pred_fallthru
      _
    %p160 = scmp.le.s32.totalorder 1, %s9
    %p161 = scmp.lt.s32.totalorder %s9, 9
    %p162 = pnand %p160, %p161
    %p163 = pneg %p162
    // Predicated region
    $region29: #{conv_block_forward.3} parent=5 // pred_check
      _
    $region30: #{conv_block_forward.3} parent=5 // pred_check_branch
      %165 = sbr.rel (%p162) target = $region32
    $region31: #{conv_block_forward.3} parent=5 // pred_region
      %s166 = ssub.s32 %s9, 1
      %s167 = smul.u32 %s18, 4
      %s168 = sadd.s32 %s167, %s19
      %p169 = scmp.lt.s32.totalorder %s168, 7
      %s170 = scalar_select %p169, %s168, 7
      %s171 = smul.addr %s170, 9
      %s172 = smul.addr %s171, 4
      %s173 = scalar_lea.vmem %s0, %s172
      %p174 = pneg %p51
      %p175 = pneg %p48
      %p176 = pneg %p72
      %p177 = pneg %p69
      %p178 = pneg %p93
      %p179 = pneg %p90
      %p180 = pneg %p123
      %p181 = pneg %p120
      %s182 = smul.u32 %s18, 4
      %s183 = sadd.s32 %s182, %s19
      %p184 = scmp.lt.s32.totalorder %s183, 7
      %s185 = scalar_select %p184, %s183, 7
      %s186 = smul.addr %s185, 9
      %s187 = smul.addr %s186, 4
      %s188 = scalar_lea.vmem %s3, %s187
      %s189 = smul.u32 %s18, 4
      %s190 = sadd.s32 %s189, %s19
      %p191 = scmp.lt.s32.totalorder %s190, 7
      %s192 = scalar_select %p191, %s190, 7
      %s193 = smul.addr %s192, 9
      %s194 = smul.addr %s193, 4
      %s195 = scalar_lea.vmem %s0, %s194
      %s196 = smul.u32 %s18, 4
      %s197 = sadd.s32 %s196, %s19
      %s198 = smul.u32 %s18, 4
      %s199 = sadd.s32 %s198, %s19
      %p200 = scmp.lt.s32.totalorder %s199, 7
      %s201 = scalar_select %p200, %s199, 7
      %s202 = smul.addr %s201, 9
      %s203 = smul.addr %s202, 4
      %s204 = scalar_lea.vmem %s3, %s203
      %s205 = smul.u32 %s18, 4
      %s206 = sadd.s32 %s205, %s19
      %v207 = vld [vmem:[%s195] sm:$0xf]
      %v208 = vld [vmem:[%s195 + $0x4] sm:$0xf]
      %v209 = vld [vmem:[%s195 + $0x8] sm:$0xf]
      %v210 = vld [vmem:[%s195 + $0xc] sm:$0xf]
      %v211 = vld [vmem:[%s195 + $0x10] sm:$0xf]
      %v212 = vld [vmem:[%s195 + $0x14] sm:$0xf]
      %v213 = vld [vmem:[%s195 + $0x18] sm:$0xf]
      %v214 = vld [vmem:[%s195 + $0x1c] sm:$0xf]
      %v215 = vld [vmem:[%s195 + $0x20] sm:$0xf]
      %v216 = vunpack.c.l.bf16 %v207
      %v217 = vunpack.c.l.bf16 %v208
      %v218 = vunpack.c.l.bf16 %v209
      %v219 = vunpack.c.l.bf16 %v210
      %v220 = vunpack.c.l.bf16 %v211
      %v221 = vunpack.c.l.bf16 %v212
      %v222 = vunpack.c.l.bf16 %v213
      %v223 = vunpack.c.l.bf16 %v214
      %v224 = vunpack.c.l.bf16 %v215
      %v225 = vld [vmem:[%s1] sm:$0x1]
      %v227 = vlaneseq
      %v228 = vshrl.u32 %v227, 7
      %v229 = vsub.s32 0, %v228
      %v230 = vrot.slane %v225, %v229
      %v232 = vmul.f32 %v216, %v230
      %v233 = vmul.f32 %v217, %v230
      %v234 = vmul.f32 %v218, %v230
      %v235 = vmul.f32 %v219, %v230
      %v236 = vmul.f32 %v220, %v230
      %v237 = vmul.f32 %v221, %v230
      %v238 = vmul.f32 %v222, %v230
      %v239 = vmul.f32 %v223, %v230
      %v240 = vmul.f32 %v224, %v230
      %v241 = vld [vmem:[%s2] sm:$0x1]
      %v243 = vlaneseq
      %v244 = vshrl.u32 %v243, 7
      %v245 = vsub.s32 0, %v244
      %v246 = vrot.slane %v241, %v245
      %v248 = vadd.f32 %v232, %v246
      %v249 = vadd.f32 %v233, %v246
      %v250 = vadd.f32 %v234, %v246
      %v251 = vadd.f32 %v235, %v246
      %v252 = vadd.f32 %v236, %v246
      %v253 = vadd.f32 %v237, %v246
      %v254 = vadd.f32 %v238, %v246
      %v255 = vadd.f32 %v239, %v246
      %v256 = vadd.f32 %v240, %v246
      %v257 = vmax.f32 %v248, 0.0
      %v258 = vmax.f32 %v249, 0.0
      %v259 = vmax.f32 %v250, 0.0
      %v260 = vmax.f32 %v251, 0.0
      %v261 = vmax.f32 %v252, 0.0
      %v262 = vmax.f32 %v253, 0.0
      %v263 = vmax.f32 %v254, 0.0
      %v264 = vmax.f32 %v255, 0.0
      %v265 = vmax.f32 %v256, 0.0
      %v266 = vpack.c.bf16 %v258, %v257
      %v267 = vpack.c.bf16 %v260, %v259
      %v268 = vpack.c.bf16 %v262, %v261
      %v269 = vpack.c.bf16 %v264, %v263
      %v270 = vpack.c.bf16 %v265, %v265
      %v276 = vunpack.c.l.b16 %v266
      %v277 = vunpack.c.h.b16 %v266
      %v278 = vunpack.c.l.b16 %v267
      %v279 = vunpack.c.h.b16 %v267
      %v280 = vunpack.c.l.b16 %v268
      %v281 = vunpack.c.h.b16 %v268
      %v282 = vunpack.c.l.b16 %v269
      %v283 = vunpack.c.h.b16 %v269
      %v284 = vunpack.c.l.b16 %v270
      %v285 = vpack.c.b16 %v276, %v276
      %v286 = vpack.c.b16 %v277, %v277
      %v287 = vpack.c.b16 %v278, %v278
      %v288 = vpack.c.b16 %v279, %v279
      %v289 = vpack.c.b16 %v280, %v280
      %v290 = vpack.c.b16 %v281, %v281
      %v291 = vpack.c.b16 %v282, %v282
      %v292 = vpack.c.b16 %v283, %v283
      %v293 = vpack.c.b16 %v284, %v284
      %303 = vst [vmem:[%s204] sm:$0xf] %v285
      %304 = vst [vmem:[%s204 + $0x4] sm:$0xf] %v286
      %305 = vst [vmem:[%s204 + $0x8] sm:$0xf] %v287
      %306 = vst [vmem:[%s204 + $0xc] sm:$0xf] %v288
      %307 = vst [vmem:[%s204 + $0x10] sm:$0xf] %v289
      %308 = vst [vmem:[%s204 + $0x14] sm:$0xf] %v290
      %309 = vst [vmem:[%s204 + $0x18] sm:$0xf] %v291
      %310 = vst [vmem:[%s204 + $0x1c] sm:$0xf] %v292
      %311 = vst [vmem:[%s204 + $0x20] sm:$0xf] %v293
      %s312 = smul.u32 %s18, 4
      %s313 = sadd.s32 %s312, %s19
      %p314 = scmp.lt.s32.totalorder %s313, 7
      %s315 = scalar_select %p314, %s313, 7
      %s316 = smul.addr %s315, 9
      %s317 = smul.addr %s316, 4
      %s318 = scalar_lea.vmem %s3, %s317
      // Predicated region
      $region33: #{conv_block_forward.3} parent=31 // pred_check
        %p319 = pneg %p120
      $region34: #{conv_block_forward.3} parent=31 // pred_check_branch
        %321 = sbr.rel (%p319) target = $region36
      $region35: #{conv_block_forward.3} parent=31 // pred_region
        %s322 = smul.u32 %s18, 4
        %s323 = sadd.s32 %s322, %s19
      $region36: #{conv_block_forward.3} parent=31 // pred_fallthru
        _
    $region32: #{conv_block_forward.3} parent=5 // pred_fallthru
      _
    %p324 = scmp.le.s32.totalorder 2, %s9
    // Predicated region
    $region37: #{conv_block_forward.3} parent=5 // pred_check
      %p325 = pneg %p324
    $region38: #{conv_block_forward.3} parent=5 // pred_check_branch
      %327 = sbr.rel (%p325) target = $region40
    $region39: #{conv_block_forward.3} parent=5 // pred_region
      %s328 = ssub.s32 %s9, 2
      // Predicated region
      $region41: #{conv_block_forward.3} parent=39 // pred_check
        %p329 = pneg %p126
      $region42: #{conv_block_forward.3} parent=39 // pred_check_branch
        %331 = sbr.rel (%p329) target = $region44
      $region43: #{conv_block_forward.3} parent=39 // pred_region
        %s332 = smul.u32 %s20, 4
        %s333 = sadd.s32 %s332, %s21
        %p334 = scmp.lt.s32.totalorder %s333, 7
        %s335 = scalar_select %p334, %s333, 7
        %s336 = smul.addr %s335, 9
        %s337 = smul.addr %s336, 4
        %s338 = scalar_lea.vmem %s3, %s337
      $region44: #{conv_block_forward.3} parent=39 // pred_fallthru
        _
    $region40: #{conv_block_forward.3} parent=5 // pred_fallthru
      _
  $region6: #{conv_block_forward.3} parent=0 // loop_footer
    %s13 = sadd.s32 1, %s9
  $region7: #{conv_block_forward.3} parent=0 // loop_footer_branch
    %8 = sbr.rel target = $region3
  $region8: #{conv_block_forward.3} parent=0 // loop_exit
    _

// kernel: conv_block_forward.2
$region0: #{conv_block_forward.2}
  #allocation0 [shape = 'u32[]', space=smem, size = 0x4, offset = 0x4, fixed_abs, tag = 'smem constant byte address 0x4 - core index']
  #allocation1 [shape = 'u32[144,128]{1,0:T(1,128)}', space=vmem, size = 0x12000, scoped, tag = 'internal scratch']
  #allocation2 [shape = 'f32[72,128]{1,0:T(8,128)}', space=vmem, size = 0x9000, scoped, tag = 'scratch operand']
  %s0 = inlined_call_operand.vmem [shape: bf16[8,108,24], index: 0, kind: input, shape index: {}]
  %s1 = inlined_call_operand.vmem [shape: bf16[3,24,128], index: 1, kind: input, shape index: {}]
  %s2 = inlined_call_operand.vmem [shape: f32[72,1], index: 2, kind: input, shape index: {}]
  %s3 = inlined_call_operand.vmem [shape: bf16[8,72,128], index: 3, kind: output, shape index: {0}]
  %s4 = inlined_call_operand.vmem [shape: f32[8,1,128], index: 4, kind: output, shape index: {1}]
  %s5 = inlined_call_operand.vmem [shape: f32[8,1,128], index: 5, kind: output, shape index: {2}]
  %6 = xla_tuple %s3, %s4, %s5
  %s7 = sld [smem:[#allocation0]]
  $region61: #{conv_block_forward.2} parent=0
    _
  %s9 = ssub.s32 1, %s7
  %s10 = scalar_select 0, %s9, %s7
  loop: start=0, step=1, limit=10
  $region2: #{conv_block_forward.2} parent=0 // loop_pre_header
    _
  $region3: #{conv_block_forward.2} parent=0 // loop_header
    %s12 = sphi 0, %s16
    %p13 = scmp.ge.s32.totalorder %s12, 10
    %s19 = sphi 0, %s31
    %s20 = sphi 0, %s27
    %s21 = sphi 0, %s19
    %s22 = sphi 0, %s20
    %s23 = sphi 0, %s21
    %s24 = sphi 0, %s22
    %s38 = sphi 0, %s40
    %s41 = sphi 0, %s38
    %s42 = sphi 0, %s41
    %s58 = sphi 0, %s42
    %s62 = sphi 0, %s62
    %s64 = sphi 0, %s62
    %s65 = sphi 0, %s64
    %s79 = sphi 0, %s65
    %s83 = sphi 0, %s83
    %s85 = sphi 0, %s83
    %s86 = sphi 0, %s85
    %s100 = sphi 0, %s86
    %s110 = sphi 0, %s112
    %s113 = sphi 0, %s110
    %s114 = sphi 0, %s113
    %s130 = sphi 0, %s114
    %s140 = sphi 0, %s142
    %s143 = sphi 0, %s140
    %s144 = sphi 0, %s143
    %s160 = sphi 0, %s144
    %s170 = sphi 0, %s172
    %s173 = sphi 0, %s170
    %s174 = sphi 0, %s173
    %s190 = sphi 0, %s174
  $region4: #{conv_block_forward.2} parent=0 // loop_header_branch
    %15 = sbr.rel (%p13) target = $region8
  $region5: #{conv_block_forward.2} parent=0 // loop_body
    %s17 = ssub.s32 %s12, 1
    %s18 = ssub.s32 %s12, 2
    %s25 = sadd.s32 1, %s20
    %p26 = scmp.ge.s32.totalorder %s25, 4
    %s27 = scalar_select %p26, 0, %s25
    %s28 = sadd.s32 1, %s19
    %s29 = scalar_select %p26, %s28, %s19
    %p30 = scmp.ge.s32.totalorder %s29, 2
    %s31 = scalar_select %p30, 0, %s29
    %s32 = smul.u32 %s19, 4
    %s33 = sadd.s32 %s32, %s20
    %s34 = smul.u32 %s31, 4
    %s35 = sadd.s32 %s34, %s27
    %s36 = ssub.s32 %s33, %s35
    %p37 = scmp.eq.s32.totalorder %s36, 0
    %s39 = sadd.s32 %s38, 1
    %s40 = scalar_select %p37, %s38, %s39
    %p43 = pneg %p37
    %p44 = scmp.eq.s32.totalorder %s12, 7
    %p45 = por %p43, %p44
    %p46 = scmp.ne.s32.totalorder %s38, %s41
    %p47 = scmp.eq.s32.totalorder %s12, 0
    %p48 = por %p46, %p47
    %p49 = scmp.ne.s32.totalorder %s38, %s41
    %p50 = scmp.eq.s32.totalorder %s17, 7
    %p51 = por %p49, %p50
    %p52 = scmp.ne.s32.totalorder %s41, %s42
    %p53 = scmp.eq.s32.totalorder %s17, 0
    %p54 = por %p52, %p53
    %p55 = scmp.ne.s32.totalorder %s41, %s42
    %p56 = scmp.eq.s32.totalorder %s18, 7
    %p57 = por %p55, %p56
    %p59 = scmp.ne.s32.totalorder %s42, %s58
    %p60 = scmp.eq.s32.totalorder %s18, 0
    %p61 = por %p59, %p60
    %s63 = sadd.s32 %s62, 1
    %p66 = scmp.eq.s32.totalorder %s12, 7
    %p67 = scmp.ne.s32.totalorder %s62, %s64
    %p68 = scmp.eq.s32.totalorder %s12, 0
    %p69 = por %p67, %p68
    %p70 = scmp.ne.s32.totalorder %s62, %s64
    %p71 = scmp.eq.s32.totalorder %s17, 7
    %p72 = por %p70, %p71
    %p73 = scmp.ne.s32.totalorder %s64, %s65
    %p74 = scmp.eq.s32.totalorder %s17, 0
    %p75 = por %p73, %p74
    %p76 = scmp.ne.s32.totalorder %s64, %s65
    %p77 = scmp.eq.s32.totalorder %s18, 7
    %p78 = por %p76, %p77
    %p80 = scmp.ne.s32.totalorder %s65, %s79
    %p81 = scmp.eq.s32.totalorder %s18, 0
    %p82 = por %p80, %p81
    %s84 = sadd.s32 %s83, 1
    %p87 = scmp.eq.s32.totalorder %s12, 7
    %p88 = scmp.ne.s32.totalorder %s83, %s85
    %p89 = scmp.eq.s32.totalorder %s12, 0
    %p90 = por %p88, %p89
    %p91 = scmp.ne.s32.totalorder %s83, %s85
    %p92 = scmp.eq.s32.totalorder %s17, 7
    %p93 = por %p91, %p92
    %p94 = scmp.ne.s32.totalorder %s85, %s86
    %p95 = scmp.eq.s32.totalorder %s17, 0
    %p96 = por %p94, %p95
    %p97 = scmp.ne.s32.totalorder %s85, %s86
    %p98 = scmp.eq.s32.totalorder %s18, 7
    %p99 = por %p97, %p98
    %p101 = scmp.ne.s32.totalorder %s86, %s100
    %p102 = scmp.eq.s32.totalorder %s18, 0
    %p103 = por %p101, %p102
    %s104 = smul.u32 %s19, 4
    %s105 = sadd.s32 %s104, %s20
    %s106 = smul.u32 %s31, 4
    %s107 = sadd.s32 %s106, %s27
    %s108 = ssub.s32 %s105, %s107
    %p109 = scmp.eq.s32.totalorder %s108, 0
    %s111 = sadd.s32 %s110, 1
    %s112 = scalar_select %p109, %s110, %s111
    %p115 = pneg %p109
    %p116 = scmp.eq.s32.totalorder %s12, 7
    %p117 = por %p115, %p116
    %p118 = scmp.ne.s32.totalorder %s110, %s113
    %p119 = scmp.eq.s32.totalorder %s12, 0
    %p120 = por %p118, %p119
    %p121 = scmp.ne.s32.totalorder %s110, %s113
    %p122 = scmp.eq.s32.totalorder %s17, 7
    %p123 = por %p121, %p122
    %p124 = scmp.ne.s32.totalorder %s113, %s114
    %p125 = scmp.eq.s32.totalorder %s17, 0
    %p126 = por %p124, %p125
    %p127 = scmp.ne.s32.totalorder %s113, %s114
    %p128 = scmp.eq.s32.totalorder %s18, 7
    %p129 = por %p127, %p128
    %p131 = scmp.ne.s32.totalorder %s114, %s130
    %p132 = scmp.eq.s32.totalorder %s18, 0
    %p133 = por %p131, %p132
    %s134 = smul.u32 %s19, 4
    %s135 = sadd.s32 %s134, %s20
    %s136 = smul.u32 %s31, 4
    %s137 = sadd.s32 %s136, %s27
    %s138 = ssub.s32 %s135, %s137
    %p139 = scmp.eq.s32.totalorder %s138, 0
    %s141 = sadd.s32 %s140, 1
    %s142 = scalar_select %p139, %s140, %s141
    %p145 = pneg %p139
    %p146 = scmp.eq.s32.totalorder %s12, 7
    %p147 = por %p145, %p146
    %p148 = scmp.ne.s32.totalorder %s140, %s143
    %p149 = scmp.eq.s32.totalorder %s12, 0
    %p150 = por %p148, %p149
    %p151 = scmp.ne.s32.totalorder %s140, %s143
    %p152 = scmp.eq.s32.totalorder %s17, 7
    %p153 = por %p151, %p152
    %p154 = scmp.ne.s32.totalorder %s143, %s144
    %p155 = scmp.eq.s32.totalorder %s17, 0
    %p156 = por %p154, %p155
    %p157 = scmp.ne.s32.totalorder %s143, %s144
    %p158 = scmp.eq.s32.totalorder %s18, 7
    %p159 = por %p157, %p158
    %p161 = scmp.ne.s32.totalorder %s144, %s160
    %p162 = scmp.eq.s32.totalorder %s18, 0
    %p163 = por %p161, %p162
    %s164 = smul.u32 %s19, 4
    %s165 = sadd.s32 %s164, %s20
    %s166 = smul.u32 %s31, 4
    %s167 = sadd.s32 %s166, %s27
    %s168 = ssub.s32 %s165, %s167
    %p169 = scmp.eq.s32.totalorder %s168, 0
    %s171 = sadd.s32 %s170, 1
    %s172 = scalar_select %p169, %s170, %s171
    %p175 = pneg %p169
    %p176 = scmp.eq.s32.totalorder %s12, 7
    %p177 = por %p175, %p176
    %p178 = scmp.ne.s32.totalorder %s170, %s173
    %p179 = scmp.eq.s32.totalorder %s12, 0
    %p180 = por %p178, %p179
    %p181 = scmp.ne.s32.totalorder %s170, %s173
    %p182 = scmp.eq.s32.totalorder %s17, 7
    %p183 = por %p181, %p182
    %p184 = scmp.ne.s32.totalorder %s173, %s174
    %p185 = scmp.eq.s32.totalorder %s17, 0
    %p186 = por %p184, %p185
    %p187 = scmp.ne.s32.totalorder %s173, %s174
    %p188 = scmp.eq.s32.totalorder %s18, 7
    %p189 = por %p187, %p188
    %p191 = scmp.ne.s32.totalorder %s174, %s190
    %p192 = scmp.eq.s32.totalorder %s18, 0
    %p193 = por %p191, %p192
    %p194 = scmp.le.s32.totalorder 1, %s12
    %p195 = scmp.lt.s32.totalorder %s12, 9
    %p196 = pnand %p194, %p195
    %p197 = pneg %p196
    // Predicated region
    $region9: #{conv_block_forward.2} parent=5 // pred_check
      _
    $region10: #{conv_block_forward.2} parent=5 // pred_check_branch
      %199 = sbr.rel (%p196) target = $region12
    $region11: #{conv_block_forward.2} parent=5 // pred_region
      %s200 = ssub.s32 %s12, 1
      // Predicated region
      $region13: #{conv_block_forward.2} parent=11 // pred_check
        %p201 = pneg %p75
      $region14: #{conv_block_forward.2} parent=11 // pred_check_branch
        %203 = sbr.rel (%p201) target = $region16
      $region15: #{conv_block_forward.2} parent=11 // pred_region
        _
      $region16: #{conv_block_forward.2} parent=11 // pred_fallthru
        _
      // Predicated region
      $region17: #{conv_block_forward.2} parent=11 // pred_check
        %p204 = pneg %p96
      $region18: #{conv_block_forward.2} parent=11 // pred_check_branch
        %206 = sbr.rel (%p204) target = $region20
      $region19: #{conv_block_forward.2} parent=11 // pred_region
        _
      $region20: #{conv_block_forward.2} parent=11 // pred_fallthru
        _
    $region12: #{conv_block_forward.2} parent=5 // pred_fallthru
      _
    %p207 = scmp.lt.s32.totalorder %s12, 8
    // Predicated region
    $region21: #{conv_block_forward.2} parent=5 // pred_check
      %p208 = pneg %p207
    $region22: #{conv_block_forward.2} parent=5 // pred_check_branch
      %210 = sbr.rel (%p208) target = $region24
    $region23: #{conv_block_forward.2} parent=5 // pred_region
      // Predicated region
      $region25: #{conv_block_forward.2} parent=23 // pred_check
        %p211 = pneg %p48
      $region26: #{conv_block_forward.2} parent=23 // pred_check_branch
        %213 = sbr.rel (%p211) target = $region28
      $region27: #{conv_block_forward.2} parent=23 // pred_region
        %s214 = smul.u32 %s19, 4
        %s215 = sadd.s32 %s214, %s20
        %p216 = scmp.lt.s32.totalorder %s215, 7
        %s217 = scalar_select %p216, %s215, 7
        %s218 = smul.addr %s217, 14
        %s219 = smul.addr %s218, 4
        %s220 = scalar_lea.vmem %s0, %s219
        %s221 = smul.u32 %s19, 4
        %s222 = sadd.s32 %s221, %s20
      $region28: #{conv_block_forward.2} parent=23 // pred_fallthru
        _
    $region24: #{conv_block_forward.2} parent=5 // pred_fallthru
      _
    %p223 = scmp.le.s32.totalorder 1, %s12
    %p224 = scmp.lt.s32.totalorder %s12, 9
    %p225 = pnand %p223, %p224
    %p226 = pneg %p225
    // Predicated region
    $region29: #{conv_block_forward.2} parent=5 // pred_check
      _
    $region30: #{conv_block_forward.2} parent=5 // pred_check_branch
      %228 = sbr.rel (%p225) target = $region32
    $region31: #{conv_block_forward.2} parent=5 // pred_region
      %s229 = ssub.s32 %s12, 1
      %s230 = smul.u32 %s21, 4
      %s231 = sadd.s32 %s230, %s22
      %p232 = scmp.lt.s32.totalorder %s231, 7
      %s233 = scalar_select %p232, %s231, 7
      %s234 = smul.addr %s233, 14
      %s235 = smul.addr %s234, 4
      %s236 = scalar_lea.vmem %s0, %s235
      %p237 = pneg %p54
      %p238 = pneg %p51
      %p239 = pneg %p75
      %p240 = pneg %p72
      %p241 = pneg %p96
      %p242 = pneg %p93
      %p243 = pneg %p126
      %p244 = pneg %p123
      %s245 = smul.u32 %s21, 4
      %s246 = sadd.s32 %s245, %s22
      %p247 = scmp.lt.s32.totalorder %s246, 7
      %s248 = scalar_select %p247, %s246, 7
      %s249 = smul.addr %s248, 9
      %s250 = smul.addr %s249, 4
      %s251 = scalar_lea.vmem %s3, %s250
      %p252 = pneg %p156
      %p253 = pneg %p153
      %s254 = smul.u32 %s21, 4
      %s255 = sadd.s32 %s254, %s22
      %p256 = scmp.lt.s32.totalorder %s255, 7
      %s257 = scalar_select %p256, %s255, 7
      %s258 = scalar_lea.vmem %s4, %s257
      %p259 = pneg %p186
      %p260 = pneg %p183
      %s261 = smul.u32 %s21, 4
      %s262 = sadd.s32 %s261, %s22
      %p263 = scmp.lt.s32.totalorder %s262, 7
      %s264 = scalar_select %p263, %s262, 7
      %s265 = scalar_lea.vmem %s5, %s264
      %s266 = smul.u32 %s21, 4
      %s267 = sadd.s32 %s266, %s22
      %p268 = scmp.lt.s32.totalorder %s267, 7
      %s269 = scalar_select %p268, %s267, 7
      %s270 = smul.addr %s269, 14
      %s271 = smul.addr %s270, 4
      %s272 = scalar_lea.vmem %s0, %s271
      %s273 = smul.u32 %s21, 4
      %s274 = sadd.s32 %s273, %s22
      %s275 = smul.u32 %s21, 4
      %s276 = sadd.s32 %s275, %s22
      %p277 = scmp.lt.s32.totalorder %s276, 7
      %s278 = scalar_select %p277, %s276, 7
      %s279 = smul.addr %s278, 9
      %s280 = smul.addr %s279, 4
      %s281 = scalar_lea.vmem %s3, %s280
      %s282 = smul.u32 %s21, 4
      %s283 = sadd.s32 %s282, %s22
      %s284 = smul.u32 %s21, 4
      %s285 = sadd.s32 %s284, %s22
      %p286 = scmp.lt.s32.totalorder %s285, 7
      %s287 = scalar_select %p286, %s285, 7
      %s288 = scalar_lea.vmem %s4, %s287
      %s289 = smul.u32 %s21, 4
      %s290 = sadd.s32 %s289, %s22
      %s291 = smul.u32 %s21, 4
      %s292 = sadd.s32 %s291, %s22
      %p293 = scmp.lt.s32.totalorder %s292, 7
      %s294 = scalar_select %p293, %s292, 7
      %s295 = scalar_lea.vmem %s5, %s294
      %s296 = smul.u32 %s21, 4
      %s297 = sadd.s32 %s296, %s22
      %v299 = vld [vmem:[%s272] sm:$0xf]
      %v300 = vld [vmem:[%s272 + $0x4] sm:$0xf]
      %v301 = vld [vmem:[%s272 + $0x8] sm:$0xf]
      %v302 = vld [vmem:[%s272 + $0xc] sm:$0xf]
      %v303 = vld [vmem:[%s272 + $0x10] sm:$0xf]
      %v304 = vld [vmem:[%s272 + $0x14] sm:$0xf]
      %v305 = vld [vmem:[%s272 + $0x18] sm:$0xf]
      %v306 = vld [vmem:[%s272 + $0x1c] sm:$0xf]
      %v307 = vld [vmem:[%s272 + $0x20] sm:$0xf]
      %v308 = vld [vmem:[%s1] sm:$0xf]
      %v309 = vld [vmem:[%s1 + $0x4] sm:$0xf]
      %v310 = vld [vmem:[%s1 + $0x8] sm:$0xf]
      %v320 = vunpack.c.l.b16 %v299
      %v321 = vunpack.c.l.b16 %v300
      %v322 = vunpack.c.l.b16 %v301
      %v323 = vunpack.c.l.b16 %v302
      %v324 = vunpack.c.l.b16 %v303
      %v325 = vunpack.c.l.b16 %v304
      %v326 = vunpack.c.l.b16 %v305
      %v327 = vunpack.c.l.b16 %v306
      %v328 = vunpack.c.l.b16 %v307
      %v329 = vpack.c.b16 %v321, %v320
      %v330 = vpack.c.b16 %v323, %v322
      %v331 = vpack.c.b16 %v325, %v324
      %v332 = vpack.c.b16 %v327, %v326
      %v333 = vpack.c.b16 %v328, %v328
      %v337 = vunpack.c.l.b16 %v308
      %v338 = vunpack.c.l.b16 %v309
      %v339 = vunpack.c.l.b16 %v310
      %v340 = vpack.c.b16 %v338, %v337
      %v341 = vpack.c.b16 %v339, %v339
      %vm343 = vcmask 195584
      %v345 = vsel %vm343, %v329, 0
      %v348 = vsel %vm343, %v330, 0
      %v351 = vsel %vm343, %v331, 0
      %v354 = vsel %vm343, %v332, 0
      %v357 = vsel %vm343, %v333, 0
      %vm359 = vcmask 1043456
      %v361 = vsel %vm359, %v341, 0
      %363 = vmatprep.subr.bf16.mxu0 0
      %364 = vmatpush1.bf16.msra.mxu0 0
      %365 = vmatprep.subr.bf16.mxu0 0
      %366 = vmatpush1.bf16.msra.mxu0 0
      %367 = vmatprep.subr.bf16.mxu0 0
      %368 = vmatpush1.bf16.msra.mxu0 0
      %369 = vmatprep.subr.bf16.mxu0 0
      %370 = vmatpush1.bf16.msra.mxu0 0
      %371 = vmatprep.subr.bf16.mxu0 0
      %372 = vmatpush1.bf16.msra.mxu0 0
      %373 = vmatprep.subr.bf16.mxu0 0
      %374 = vmatpush1.bf16.msra.mxu0 0
      %375 = vmatprep.subr.bf16.mxu0 0
      %376 = vmatpush1.bf16.msra.mxu0 %v361
      %377 = vmatprep.subr.bf16.mxu0 0
      %378 = vmatpush1.bf16.msra.mxu0 %v340
      %379 = vmatprep.subr.bf16.mxu0 0
      %380 = vmatpush2.bf16.msra.mxu0 0
      %381 = vmatprep.subr.bf16.mxu0 0
      %382 = vmatpush2.bf16.msra.mxu0 0
      %383 = vmatprep.subr.bf16.mxu0 0
      %384 = vmatpush2.bf16.msra.mxu0 0
      %385 = vmatprep.subr.bf16.mxu0 0
      %386 = vmatpush2.bf16.msra.mxu0 0
      %387 = vmatprep.subr.bf16.mxu0 0
      %388 = vmatpush2.bf16.msra.mxu0 0
      %389 = vmatprep.subr.bf16.mxu0 0
      %390 = vmatpush2.bf16.msra.mxu0 0
      %391 = vmatprep.subr.bf16.mxu0 0
      %392 = vmatpush2.bf16.msra.mxu0 0
      %393 = vmatprep.subr.bf16.mxu0 0
      %394 = vmatpush2.bf16.msra.mxu0 0
      %395 = vmatprep.mubr.bf16.mxu0 0
      %396 = vmatmul.mubr.bf16.gmra.mxu0 %v345
      %v397 = vpop.f32.mrf.mxu0
      %v398 = vadd.f32 0.0, %v397
      %v399 = vpop.f32.mrf.mxu0
      %v400 = vpop.f32.mrf.mxu0
      %v401 = vadd.f32 0.0, %v400
      %v402 = vpop.f32.mrf.mxu0
      %403 = vmatprep.mubr.bf16.mxu0 0
      %404 = vmatmul.mubr.bf16.gmra.mxu0 %v348
      %v405 = vpop.f32.mrf.mxu0
      %v406 = vadd.f32 0.0, %v405
      %v407 = vpop.f32.mrf.mxu0
      %v408 = vpop.f32.mrf.mxu0
      %v409 = vadd.f32 0.0, %v408
      %v410 = vpop.f32.mrf.mxu0
      %411 = vmatprep.mubr.bf16.mxu0 0
      %412 = vmatmul.mubr.bf16.gmra.mxu0 %v351
      %v413 = vpop.f32.mrf.mxu0
      %v414 = vadd.f32 0.0, %v413
      %v415 = vpop.f32.mrf.mxu0
      %v416 = vpop.f32.mrf.mxu0
      %v417 = vadd.f32 0.0, %v416
      %v418 = vpop.f32.mrf.mxu0
      %419 = vmatprep.mubr.bf16.mxu0 0
      %420 = vmatmul.mubr.bf16.gmra.mxu0 %v354
      %v421 = vpop.f32.mrf.mxu0
      %v422 = vadd.f32 0.0, %v421
      %v423 = vpop.f32.mrf.mxu0
      %v424 = vpop.f32.mrf.mxu0
      %v425 = vadd.f32 0.0, %v424
      %v426 = vpop.f32.mrf.mxu0
      %427 = vmatprep.mubr.bf16.mxu0 0
      %428 = vmatmul.mubr.bf16.gmra.mxu0 %v357
      %v429 = vpop.f32.mrf.mxu0
      %v430 = vadd.f32 0.0, %v429
      %v431 = vpop.f32.mrf.mxu0
      %v432 = vpop.f32.mrf.mxu0
      %v433 = vpop.f32.mrf.mxu0
      %434 = vdwg.mxu0
      %435 = vst [vmem:[#allocation2] sm:$0xff] %v398
      %436 = vst [vmem:[#allocation2 + $0x8] sm:$0xff] %v401
      %437 = vst [vmem:[#allocation2 + $0x10] sm:$0xff] %v406
      %438 = vst [vmem:[#allocation2 + $0x18] sm:$0xff] %v409
      %439 = vst [vmem:[#allocation2 + $0x20] sm:$0xff] %v414
      %440 = vst [vmem:[#allocation2 + $0x28] sm:$0xff] %v417
      %441 = vst [vmem:[#allocation2 + $0x30] sm:$0xff] %v422
      %442 = vst [vmem:[#allocation2 + $0x38] sm:$0xff] %v425
      %443 = vst [vmem:[#allocation2 + $0x40] sm:$0xff] %v430
      %v444 = vld [vmem:[%s272 + $0x8] sm:$0xe]
      %v445 = vld [vmem:[%s272 + $0xc] sm:$0xf]
      %v446 = vld [vmem:[%s272 + $0x10] sm:$0xf]
      %v447 = vld [vmem:[%s272 + $0x14] sm:$0xf]
      %v448 = vld [vmem:[%s272 + $0x18] sm:$0xf]
      %v449 = vld [vmem:[%s272 + $0x1c] sm:$0xf]
      %v450 = vld [vmem:[%s272 + $0x20] sm:$0xf]
      %v451 = vld [vmem:[%s272 + $0x24] sm:$0xf]
      %v452 = vld [vmem:[%s272 + $0x28] sm:$0xf]
      %v453 = vld [vmem:[%s272 + $0x2c] sm:$0x1]
      %s454 = scalar_lea.vmem %s1, 12
      %v455 = vld [vmem:[%s454] sm:$0xf]
      %v456 = vld [vmem:[%s454 + $0x4] sm:$0xf]
      %v457 = vld [vmem:[%s454 + $0x8] sm:$0xf]
      %v468 = vunpack.c.l.b16 %v444
      %v469 = vunpack.c.l.b16 %v445
      %v470 = vunpack.c.l.b16 %v446
      %v471 = vunpack.c.l.b16 %v447
      %v472 = vunpack.c.l.b16 %v448
      %v473 = vunpack.c.l.b16 %v449
      %v474 = vunpack.c.l.b16 %v450
      %v475 = vunpack.c.l.b16 %v451
      %v476 = vunpack.c.l.b16 %v452
      %v477 = vunpack.c.l.b16 %v453
      %v478 = vpack.c.b16 %v469, %v468
      %v479 = vpack.c.b16 %v471, %v470
      %v480 = vpack.c.b16 %v473, %v472
      %v481 = vpack.c.b16 %v475, %v474
      %v482 = vpack.c.b16 %v477, %v476
      %vm483 = vcmask 1046528
      %v484 = vrot.slane %v478, 1
      %v485 = vrot.slane %v479, 1
      %v486 = vsel %vm483, %v484, %v485
      %v487 = vrot.slane %v480, 1
      %v488 = vsel %vm483, %v485, %v487
      %v489 = vrot.slane %v481, 1
      %v490 = vsel %vm483, %v487, %v489
      %v491 = vrot.slane %v482, 1
      %v492 = vsel %vm483, %v489, %v491
      %v496 = vunpack.c.l.b16 %v455
      %v497 = vunpack.c.l.b16 %v456
      %v498 = vunpack.c.l.b16 %v457
      %v499 = vpack.c.b16 %v497, %v496
      %v500 = vpack.c.b16 %v498, %v498
      %v503 = vsel %vm343, %v486, 0
      %v506 = vsel %vm343, %v488, 0
      %v509 = vsel %vm343, %v490, 0
      %v512 = vsel %vm343, %v492, 0
      %v515 = vsel %vm343, %v491, 0
      %v518 = vsel %vm359, %v500, 0
      %520 = vmatprep.subr.bf16.mxu0 0
      %521 = vmatpush1.bf16.msra.mxu0 0
      %522 = vmatprep.subr.bf16.mxu0 0
      %523 = vmatpush1.bf16.msra.mxu0 0
      %524 = vmatprep.subr.bf16.mxu0 0
      %525 = vmatpush1.bf16.msra.mxu0 0
      %526 = vmatprep.subr.bf16.mxu0 0
      %527 = vmatpush1.bf16.msra.mxu0 0
      %528 = vmatprep.subr.bf16.mxu0 0
      %529 = vmatpush1.bf16.msra.mxu0 0
      %530 = vmatprep.subr.bf16.mxu0 0
      %531 = vmatpush1.bf16.msra.mxu0 0
      %532 = vmatprep.subr.bf16.mxu0 0
      %533 = vmatpush1.bf16.msra.mxu0 %v518
      %534 = vmatprep.subr.bf16.mxu0 0
      %535 = vmatpush1.bf16.msra.mxu0 %v499
      %536 = vmatprep.subr.bf16.mxu0 0
      %537 = vmatpush2.bf16.msra.mxu0 0
      %538 = vmatprep.subr.bf16.mxu0 0
      %539 = vmatpush2.bf16.msra.mxu0 0
      %540 = vmatprep.subr.bf16.mxu0 0
      %541 = vmatpush2.bf16.msra.mxu0 0
      %542 = vmatprep.subr.bf16.mxu0 0
      %543 = vmatpush2.bf16.msra.mxu0 0
      %544 = vmatprep.subr.bf16.mxu0 0
      %545 = vmatpush2.bf16.msra.mxu0 0
      %546 = vmatprep.subr.bf16.mxu0 0
      %547 = vmatpush2.bf16.msra.mxu0 0
      %548 = vmatprep.subr.bf16.mxu0 0
      %549 = vmatpush2.bf16.msra.mxu0 0
      %550 = vmatprep.subr.bf16.mxu0 0
      %551 = vmatpush2.bf16.msra.mxu0 0
      %552 = vmatprep.mubr.bf16.mxu0 0
      %553 = vmatmul.mubr.bf16.gmra.mxu0 %v503
      %v554 = vpop.f32.mrf.mxu0
      %v555 = vadd.f32 0.0, %v554
      %v556 = vpop.f32.mrf.mxu0
      %v557 = vpop.f32.mrf.mxu0
      %v558 = vadd.f32 0.0, %v557
      %v559 = vpop.f32.mrf.mxu0
      %560 = vmatprep.mubr.bf16.mxu0 0
      %561 = vmatmul.mubr.bf16.gmra.mxu0 %v506
      %v562 = vpop.f32.mrf.mxu0
      %v563 = vadd.f32 0.0, %v562
      %v564 = vpop.f32.mrf.mxu0
      %v565 = vpop.f32.mrf.mxu0
      %v566 = vadd.f32 0.0, %v565
      %v567 = vpop.f32.mrf.mxu0
      %568 = vmatprep.mubr.bf16.mxu0 0
      %569 = vmatmul.mubr.bf16.gmra.mxu0 %v509
      %v570 = vpop.f32.mrf.mxu0
      %v571 = vadd.f32 0.0, %v570
      %v572 = vpop.f32.mrf.mxu0
      %v573 = vpop.f32.mrf.mxu0
      %v574 = vadd.f32 0.0, %v573
      %v575 = vpop.f32.mrf.mxu0
      %576 = vmatprep.mubr.bf16.mxu0 0
      %577 = vmatmul.mubr.bf16.gmra.mxu0 %v512
      %v578 = vpop.f32.mrf.mxu0
      %v579 = vadd.f32 0.0, %v578
      %v580 = vpop.f32.mrf.mxu0
      %v581 = vpop.f32.mrf.mxu0
      %v582 = vadd.f32 0.0, %v581
      %v583 = vpop.f32.mrf.mxu0
      %584 = vmatprep.mubr.bf16.mxu0 0
      %585 = vmatmul.mubr.bf16.gmra.mxu0 %v515
      %v586 = vpop.f32.mrf.mxu0
      %v587 = vadd.f32 0.0, %v586
      %v588 = vpop.f32.mrf.mxu0
      %v589 = vpop.f32.mrf.mxu0
      %v590 = vpop.f32.mrf.mxu0
      %591 = vdwg.mxu0
      %v592 = vld [vmem:[#allocation2] sm:$0xff]
      %v593 = vld [vmem:[#allocation2 + $0x8] sm:$0xff]
      %v594 = vld [vmem:[#allocation2 + $0x10] sm:$0xff]
      %v595 = vld [vmem:[#allocation2 + $0x18] sm:$0xff]
      %v596 = vld [vmem:[#allocation2 + $0x20] sm:$0xff]
      %v597 = vld [vmem:[#allocation2 + $0x28] sm:$0xff]
      %v598 = vld [vmem:[#allocation2 + $0x30] sm:$0xff]
      %v599 = vld [vmem:[#allocation2 + $0x38] sm:$0xff]
      %v600 = vld [vmem:[#allocation2 + $0x40] sm:$0xff]
      %v601 = vadd.f32 %v592, %v555
      %v602 = vadd.f32 %v593, %v558
      %v603 = vadd.f32 %v594, %v563
      %v604 = vadd.f32 %v595, %v566
      %v605 = vadd.f32 %v596, %v571
      %v606 = vadd.f32 %v597, %v574
      %v607 = vadd.f32 %v598, %v579
      %v608 = vadd.f32 %v599, %v582
      %v609 = vadd.f32 %v600, %v587
      %610 = vst [vmem:[#allocation2] sm:$0xff] %v601
      %611 = vst [vmem:[#allocation2 + $0x8] sm:$0xff] %v602
      %612 = vst [vmem:[#allocation2 + $0x10] sm:$0xff] %v603
      %613 = vst [vmem:[#allocation2 + $0x18] sm:$0xff] %v604
      %614 = vst [vmem:[#allocation2 + $0x20] sm:$0xff] %v605
      %615 = vst [vmem:[#allocation2 + $0x28] sm:$0xff] %v606
      %616 = vst [vmem:[#allocation2 + $0x30] sm:$0xff] %v607
      %617 = vst [vmem:[#allocation2 + $0x38] sm:$0xff] %v608
      %618 = vst [vmem:[#allocation2 + $0x40] sm:$0xff] %v609
      %v619 = vld [vmem:[%s272 + $0x10] sm:$0xc]
      %v620 = vld [vmem:[%s272 + $0x14] sm:$0xf]
      %v621 = vld [vmem:[%s272 + $0x18] sm:$0xf]
      %v622 = vld [vmem:[%s272 + $0x1c] sm:$0xf]
      %v623 = vld [vmem:[%s272 + $0x20] sm:$0xf]
      %v624 = vld [vmem:[%s272 + $0x24] sm:$0xf]
      %v625 = vld [vmem:[%s272 + $0x28] sm:$0xf]
      %v626 = vld [vmem:[%s272 + $0x2c] sm:$0xf]
      %v627 = vld [vmem:[%s272 + $0x30] sm:$0xf]
      %v628 = vld [vmem:[%s272 + $0x34] sm:$0x3]
      %s629 = scalar_lea.vmem %s1, 24
      %v630 = vld [vmem:[%s629] sm:$0xf]
      %v631 = vld [vmem:[%s629 + $0x4] sm:$0xf]
      %v632 = vld [vmem:[%s629 + $0x8] sm:$0xf]
      %v643 = vunpack.c.l.b16 %v619
      %v644 = vunpack.c.l.b16 %v620
      %v645 = vunpack.c.l.b16 %v621
      %v646 = vunpack.c.l.b16 %v622
      %v647 = vunpack.c.l.b16 %v623
      %v648 = vunpack.c.l.b16 %v624
      %v649 = vunpack.c.l.b16 %v625
      %v650 = vunpack.c.l.b16 %v626
      %v651 = vunpack.c.l.b16 %v627
      %v652 = vunpack.c.l.b16 %v628
      %v653 = vpack.c.b16 %v644, %v643
      %v654 = vpack.c.b16 %v646, %v645
      %v655 = vpack.c.b16 %v648, %v647
      %v656 = vpack.c.b16 %v650, %v649
      %v657 = vpack.c.b16 %v652, %v651
      %vm658 = vcmask 1045504
      %v659 = vrot.slane %v653, 2
      %v660 = vrot.slane %v654, 2
      %v661 = vsel %vm658, %v659, %v660
      %v662 = vrot.slane %v655, 2
      %v663 = vsel %vm658, %v660, %v662
      %v664 = vrot.slane %v656, 2
      %v665 = vsel %vm658, %v662, %v664
      %v666 = vrot.slane %v657, 2
      %v667 = vsel %vm658, %v664, %v666
      %v671 = vunpack.c.l.b16 %v630
      %v672 = vunpack.c.l.b16 %v631
      %v673 = vunpack.c.l.b16 %v632
      %v674 = vpack.c.b16 %v672, %v671
      %v675 = vpack.c.b16 %v673, %v673
      %v678 = vsel %vm343, %v661, 0
      %v681 = vsel %vm343, %v663, 0
      %v684 = vsel %vm343, %v665, 0
      %v687 = vsel %vm343, %v667, 0
      %v690 = vsel %vm343, %v666, 0
      %v693 = vsel %vm359, %v675, 0
      %695 = vmatprep.subr.bf16.mxu0 0
      %696 = vmatpush1.bf16.msra.mxu0 0
      %697 = vmatprep.subr.bf16.mxu0 0
      %698 = vmatpush1.bf16.msra.mxu0 0
      %699 = vmatprep.subr.bf16.mxu0 0
      %700 = vmatpush1.bf16.msra.mxu0 0
      %701 = vmatprep.subr.bf16.mxu0 0
      %702 = vmatpush1.bf16.msra.mxu0 0
      %703 = vmatprep.subr.bf16.mxu0 0
      %704 = vmatpush1.bf16.msra.mxu0 0
      %705 = vmatprep.subr.bf16.mxu0 0
      %706 = vmatpush1.bf16.msra.mxu0 0
      %707 = vmatprep.subr.bf16.mxu0 0
      %708 = vmatpush1.bf16.msra.mxu0 %v693
      %709 = vmatprep.subr.bf16.mxu0 0
      %710 = vmatpush1.bf16.msra.mxu0 %v674
      %711 = vmatprep.subr.bf16.mxu0 0
      %712 = vmatpush2.bf16.msra.mxu0 0
      %713 = vmatprep.subr.bf16.mxu0 0
      %714 = vmatpush2.bf16.msra.mxu0 0
      %715 = vmatprep.subr.bf16.mxu0 0
      %716 = vmatpush2.bf16.msra.mxu0 0
      %717 = vmatprep.subr.bf16.mxu0 0
      %718 = vmatpush2.bf16.msra.mxu0 0
      %719 = vmatprep.subr.bf16.mxu0 0
      %720 = vmatpush2.bf16.msra.mxu0 0
      %721 = vmatprep.subr.bf16.mxu0 0
      %722 = vmatpush2.bf16.msra.mxu0 0
      %723 = vmatprep.subr.bf16.mxu0 0
      %724 = vmatpush2.bf16.msra.mxu0 0
      %725 = vmatprep.subr.bf16.mxu0 0
      %726 = vmatpush2.bf16.msra.mxu0 0
      %727 = vmatprep.mubr.bf16.mxu0 0
      %728 = vmatmul.mubr.bf16.gmra.mxu0 %v678
      %v729 = vpop.f32.mrf.mxu0
      %v730 = vadd.f32 0.0, %v729
      %v731 = vpop.f32.mrf.mxu0
      %v732 = vpop.f32.mrf.mxu0
      %v733 = vadd.f32 0.0, %v732
      %v734 = vpop.f32.mrf.mxu0
      %735 = vmatprep.mubr.bf16.mxu0 0
      %736 = vmatmul.mubr.bf16.gmra.mxu0 %v681
      %v737 = vpop.f32.mrf.mxu0
      %v738 = vadd.f32 0.0, %v737
      %v739 = vpop.f32.mrf.mxu0
      %v740 = vpop.f32.mrf.mxu0
      %v741 = vadd.f32 0.0, %v740
      %v742 = vpop.f32.mrf.mxu0
      %743 = vmatprep.mubr.bf16.mxu0 0
      %744 = vmatmul.mubr.bf16.gmra.mxu0 %v684
      %v745 = vpop.f32.mrf.mxu0
      %v746 = vadd.f32 0.0, %v745
      %v747 = vpop.f32.mrf.mxu0
      %v748 = vpop.f32.mrf.mxu0
      %v749 = vadd.f32 0.0, %v748
      %v750 = vpop.f32.mrf.mxu0
      %751 = vmatprep.mubr.bf16.mxu0 0
      %752 = vmatmul.mubr.bf16.gmra.mxu0 %v687
      %v753 = vpop.f32.mrf.mxu0
      %v754 = vadd.f32 0.0, %v753
      %v755 = vpop.f32.mrf.mxu0
      %v756 = vpop.f32.mrf.mxu0
      %v757 = vadd.f32 0.0, %v756
      %v758 = vpop.f32.mrf.mxu0
      %759 = vmatprep.mubr.bf16.mxu0 0
      %760 = vmatmul.mubr.bf16.gmra.mxu0 %v690
      %v761 = vpop.f32.mrf.mxu0
      %v762 = vadd.f32 0.0, %v761
      %v763 = vpop.f32.mrf.mxu0
      %v764 = vpop.f32.mrf.mxu0
      %v765 = vpop.f32.mrf.mxu0
      %766 = vdwg.mxu0
      %v767 = vld [vmem:[#allocation2] sm:$0xff]
      %v768 = vld [vmem:[#allocation2 + $0x8] sm:$0xff]
      %v769 = vld [vmem:[#allocation2 + $0x10] sm:$0xff]
      %v770 = vld [vmem:[#allocation2 + $0x18] sm:$0xff]
      %v771 = vld [vmem:[#allocation2 + $0x20] sm:$0xff]
      %v772 = vld [vmem:[#allocation2 + $0x28] sm:$0xff]
      %v773 = vld [vmem:[#allocation2 + $0x30] sm:$0xff]
      %v774 = vld [vmem:[#allocation2 + $0x38] sm:$0xff]
      %v775 = vld [vmem:[#allocation2 + $0x40] sm:$0xff]
      %v776 = vadd.f32 %v767, %v730
      %v777 = vadd.f32 %v768, %v733
      %v778 = vadd.f32 %v769, %v738
      %v779 = vadd.f32 %v770, %v741
      %v780 = vadd.f32 %v771, %v746
      %v781 = vadd.f32 %v772, %v749
      %v782 = vadd.f32 %v773, %v754
      %v783 = vadd.f32 %v774, %v757
      %v784 = vadd.f32 %v775, %v762
      %785 = vst [vmem:[#allocation2] sm:$0xff] %v776
      %786 = vst [vmem:[#allocation2 + $0x8] sm:$0xff] %v777
      %787 = vst [vmem:[#allocation2 + $0x10] sm:$0xff] %v778
      %788 = vst [vmem:[#allocation2 + $0x18] sm:$0xff] %v779
      %789 = vst [vmem:[#allocation2 + $0x20] sm:$0xff] %v780
      %790 = vst [vmem:[#allocation2 + $0x28] sm:$0xff] %v781
      %791 = vst [vmem:[#allocation2 + $0x30] sm:$0xff] %v782
      %792 = vst [vmem:[#allocation2 + $0x38] sm:$0xff] %v783
      %793 = vst [vmem:[#allocation2 + $0x40] sm:$0xff] %v784
      %v794 = vld [vmem:[%s2] sm:$0xff]
      %v795 = vld [vmem:[%s2 + $0x8] sm:$0xff]
      %v796 = vld [vmem:[%s2 + $0x10] sm:$0xff]
      %v797 = vld [vmem:[%s2 + $0x18] sm:$0xff]
      %v798 = vld [vmem:[%s2 + $0x20] sm:$0xff]
      %v799 = vld [vmem:[%s2 + $0x28] sm:$0xff]
      %v800 = vld [vmem:[%s2 + $0x30] sm:$0xff]
      %v801 = vld [vmem:[%s2 + $0x38] sm:$0xff]
      %v802 = vld [vmem:[%s2 + $0x40] sm:$0xff]
      %v803 = vld [vmem:[#allocation2] sm:$0xff]
      %v804 = vld [vmem:[#allocation2 + $0x8] sm:$0xff]
      %v805 = vld [vmem:[#allocation2 + $0x10] sm:$0xff]
      %v806 = vld [vmem:[#allocation2 + $0x18] sm:$0xff]
      %v807 = vld [vmem:[#allocation2 + $0x20] sm:$0xff]
      %v808 = vld [vmem:[#allocation2 + $0x28] sm:$0xff]
      %v809 = vld [vmem:[#allocation2 + $0x30] sm:$0xff]
      %v810 = vld [vmem:[#allocation2 + $0x38] sm:$0xff]
      %v811 = vld [vmem:[#allocation2 + $0x40] sm:$0xff]
      %813 = vset.pattern.permute.xlu0 0
      %814 = vperm.xlu0 %813, %v794
      %v815 = vpop.permute.xlu0 %814
      %818 = vset.pattern.permute.xlu0 0
      %819 = vperm.xlu0 %818, %v795
      %v820 = vpop.permute.xlu0 %819
      %823 = vset.pattern.permute.xlu0 0
      %824 = vperm.xlu0 %823, %v796
      %v825 = vpop.permute.xlu0 %824
      %828 = vset.pattern.permute.xlu0 0
      %829 = vperm.xlu0 %828, %v797
      %v830 = vpop.permute.xlu0 %829
      %833 = vset.pattern.permute.xlu0 0
      %834 = vperm.xlu0 %833, %v798
      %v835 = vpop.permute.xlu0 %834
      %838 = vset.pattern.permute.xlu0 0
      %839 = vperm.xlu0 %838, %v799
      %v840 = vpop.permute.xlu0 %839
      %843 = vset.pattern.permute.xlu0 0
      %844 = vperm.xlu0 %843, %v800
      %v845 = vpop.permute.xlu0 %844
      %848 = vset.pattern.permute.xlu0 0
      %849 = vperm.xlu0 %848, %v801
      %v850 = vpop.permute.xlu0 %849
      %853 = vset.pattern.permute.xlu0 0
      %854 = vperm.xlu0 %853, %v802
      %v855 = vpop.permute.xlu0 %854
      %v857 = vmul.f32 %v803, %v815
      %v858 = vmul.f32 %v804, %v820
      %v859 = vmul.f32 %v805, %v825
      %v860 = vmul.f32 %v806, %v830
      %v861 = vmul.f32 %v807, %v835
      %v862 = vmul.f32 %v808, %v840
      %v863 = vmul.f32 %v809, %v845
      %v864 = vmul.f32 %v810, %v850
      %v865 = vmul.f32 %v811, %v855
      %v866 = vpack.c.bf16 %v858, %v857
      %v867 = vpack.c.bf16 %v860, %v859
      %v868 = vpack.c.bf16 %v862, %v861
      %v869 = vpack.c.bf16 %v864, %v863
      %v870 = vpack.c.bf16 %v865, %v865
      %v876 = vunpack.c.l.b16 %v866
      %v877 = vunpack.c.h.b16 %v866
      %v878 = vunpack.c.l.b16 %v867
      %v879 = vunpack.c.h.b16 %v867
      %v880 = vunpack.c.l.b16 %v868
      %v881 = vunpack.c.h.b16 %v868
      %v882 = vunpack.c.l.b16 %v869
      %v883 = vunpack.c.h.b16 %v869
      %v884 = vunpack.c.l.b16 %v870
      %v885 = vpack.c.b16 %v876, %v876
      %v886 = vpack.c.b16 %v877, %v877
      %v887 = vpack.c.b16 %v878, %v878
      %v888 = vpack.c.b16 %v879, %v879
      %v889 = vpack.c.b16 %v880, %v880
      %v890 = vpack.c.b16 %v881, %v881
      %v891 = vpack.c.b16 %v882, %v882
      %v892 = vpack.c.b16 %v883, %v883
      %v893 = vpack.c.b16 %v884, %v884
      %903 = vst [vmem:[%s281] sm:$0xf] %v885
      %904 = vst [vmem:[%s281 + $0x4] sm:$0xf] %v886
      %905 = vst [vmem:[%s281 + $0x8] sm:$0xf] %v887
      %906 = vst [vmem:[%s281 + $0xc] sm:$0xf] %v888
      %907 = vst [vmem:[%s281 + $0x10] sm:$0xf] %v889
      %908 = vst [vmem:[%s281 + $0x14] sm:$0xf] %v890
      %909 = vst [vmem:[%s281 + $0x18] sm:$0xf] %v891
      %910 = vst [vmem:[%s281 + $0x1c] sm:$0xf] %v892
      %911 = vst [vmem:[%s281 + $0x20] sm:$0xf] %v893
      %v912 = vadd.f32 %v857, %v858
      %v913 = vadd.f32 %v912, %v859
      %v914 = vadd.f32 %v913, %v860
      %v915 = vadd.f32 %v914, %v861
      %v916 = vadd.f32 %v915, %v862
      %v917 = vadd.f32 %v916, %v863
      %v918 = vadd.f32 %v917, %v864
      %v919 = vadd.f32 %v918, %v865
      %v920 = vrot.slane %v919, 4
      %v921 = vadd.f32 %v919, %v920
      %v922 = vrot.slane %v921, 2
      %v923 = vadd.f32 %v921, %v922
      %v924 = vrot.slane %v923, 1
      %v925 = vadd.f32 %v923, %v924
      %v926 = vmul.f32 %v925, 0.015625
      %v927 = vsub.f32 %v857, %v926
      %v928 = vsub.f32 %v858, %v926
      %v929 = vsub.f32 %v859, %v926
      %v930 = vsub.f32 %v860, %v926
      %v931 = vsub.f32 %v861, %v926
      %v932 = vsub.f32 %v862, %v926
      %v933 = vsub.f32 %v863, %v926
      %v934 = vsub.f32 %v864, %v926
      %v935 = vsub.f32 %v865, %v926
      %v936 = vmul.f32 %v927, %v815
      %v937 = vmul.f32 %v928, %v820
      %v938 = vmul.f32 %v929, %v825
      %v939 = vmul.f32 %v930, %v830
      %v940 = vmul.f32 %v931, %v835
      %v941 = vmul.f32 %v932, %v840
      %v942 = vmul.f32 %v933, %v845
      %v943 = vmul.f32 %v934, %v850
      %v944 = vmul.f32 %v935, %v855
      %v945 = vmul.f32 %v936, %v936
      %v946 = vmul.f32 %v937, %v937
      %v947 = vmul.f32 %v938, %v938
      %v948 = vmul.f32 %v939, %v939
      %v949 = vmul.f32 %v940, %v940
      %v950 = vmul.f32 %v941, %v941
      %v951 = vmul.f32 %v942, %v942
      %v952 = vmul.f32 %v943, %v943
      %v953 = vmul.f32 %v944, %v944
      %v954 = vadd.f32 %v945, %v946
      %v955 = vadd.f32 %v954, %v947
      %v956 = vadd.f32 %v955, %v948
      %v957 = vadd.f32 %v956, %v949
      %v958 = vadd.f32 %v957, %v950
      %v959 = vadd.f32 %v958, %v951
      %v960 = vadd.f32 %v959, %v952
      %v961 = vadd.f32 %v960, %v953
      %v962 = vrot.slane %v961, 4
      %v963 = vadd.f32 %v961, %v962
      %v964 = vrot.slane %v963, 2
      %v965 = vadd.f32 %v963, %v964
      %v966 = vrot.slane %v965, 1
      %v967 = vadd.f32 %v965, %v966
      %968 = vst [vmem:[%s288] sm:$0x1] %v925
      %969 = vst [vmem:[%s295] sm:$0x1] %v967
      %s970 = smul.u32 %s21, 4
      %s971 = sadd.s32 %s970, %s22
      %p972 = scmp.lt.s32.totalorder %s971, 7
      %s973 = scalar_select %p972, %s971, 7
      %s974 = smul.addr %s973, 9
      %s975 = smul.addr %s974, 4
      %s976 = scalar_lea.vmem %s3, %s975
      %s977 = smul.u32 %s21, 4
      %s978 = sadd.s32 %s977, %s22
      %p979 = scmp.lt.s32.totalorder %s978, 7
      %s980 = scalar_select %p979, %s978, 7
      %s981 = scalar_lea.vmem %s4, %s980
      %s982 = smul.u32 %s21, 4
      %s983 = sadd.s32 %s982, %s22
      %p984 = scmp.lt.s32.totalorder %s983, 7
      %s985 = scalar_select %p984, %s983, 7
      %s986 = scalar_lea.vmem %s5, %s985
      // Predicated region
      $region33: #{conv_block_forward.2} parent=31 // pred_check
        %p987 = pneg %p123
      $region34: #{conv_block_forward.2} parent=31 // pred_check_branch
        %989 = sbr.rel (%p987) target = $region36
      $region35: #{conv_block_forward.2} parent=31 // pred_region
        %s990 = smul.u32 %s21, 4
        %s991 = sadd.s32 %s990, %s22
      $region36: #{conv_block_forward.2} parent=31 // pred_fallthru
        _
      // Predicated region
      $region37: #{conv_block_forward.2} parent=31 // pred_check
        %p992 = pneg %p153
      $region38: #{conv_block_forward.2} parent=31 // pred_check_branch
        %994 = sbr.rel (%p992) target = $region40
      $region39: #{conv_block_forward.2} parent=31 // pred_region
        %s995 = smul.u32 %s21, 4
        %s996 = sadd.s32 %s995, %s22
      $region40: #{conv_block_forward.2} parent=31 // pred_fallthru
        _
      // Predicated region
      $region41: #{conv_block_forward.2} parent=31 // pred_check
        %p997 = pneg %p183
      $region42: #{conv_block_forward.2} parent=31 // pred_check_branch
        %999 = sbr.rel (%p997) target = $region44
      $region43: #{conv_block_forward.2} parent=31 // pred_region
        %s1000 = smul.u32 %s21, 4
        %s1001 = sadd.s32 %s1000, %s22
      $region44: #{conv_block_forward.2} parent=31 // pred_fallthru
        _
    $region32: #{conv_block_forward.2} parent=5 // pred_fallthru
      _
    %p1002 = scmp.le.s32.totalorder 2, %s12
    // Predicated region
    $region45: #{conv_block_forward.2} parent=5 // pred_check
      %p1003 = pneg %p1002
    $region46: #{conv_block_forward.2} parent=5 // pred_check_branch
      %1005 = sbr.rel (%p1003) target = $region48
    $region47: #{conv_block_forward.2} parent=5 // pred_region
      %s1006 = ssub.s32 %s12, 2
      // Predicated region
      $region49: #{conv_block_forward.2} parent=47 // pred_check
        %p1007 = pneg %p129
      $region50: #{conv_block_forward.2} parent=47 // pred_check_branch
        %1009 = sbr.rel (%p1007) target = $region52
      $region51: #{conv_block_forward.2} parent=47 // pred_region
        %s1010 = smul.u32 %s23, 4
        %s1011 = sadd.s32 %s1010, %s24
        %p1012 = scmp.lt.s32.totalorder %s1011, 7
        %s1013 = scalar_select %p1012, %s1011, 7
        %s1014 = smul.addr %s1013, 9
        %s1015 = smul.addr %s1014, 4
        %s1016 = scalar_lea.vmem %s3, %s1015
      $region52: #{conv_block_forward.2} parent=47 // pred_fallthru
        _
      // Predicated region
      $region53: #{conv_block_forward.2} parent=47 // pred_check
        %p1017 = pneg %p159
      $region54: #{conv_block_forward.2} parent=47 // pred_check_branch
        %1019 = sbr.rel (%p1017) target = $region56
      $region55: #{conv_block_forward.2} parent=47 // pred_region
        %s1020 = smul.u32 %s23, 4
        %s1021 = sadd.s32 %s1020, %s24
        %p1022 = scmp.lt.s32.totalorder %s1021, 7
        %s1023 = scalar_select %p1022, %s1021, 7
        %s1024 = scalar_lea.vmem %s4, %s1023
      $region56: #{conv_block_forward.2} parent=47 // pred_fallthru
        _
      // Predicated region
      $region57: #{conv_block_forward.2} parent=47 // pred_check
        %p1025 = pneg %p189
      $region58: #{conv_block_forward.2} parent=47 // pred_check_branch
        %1027 = sbr.rel (%p1025) target = $region60
      $region59: #{conv_block_forward.2} parent=47 // pred_region
        %s1028 = smul.u32 %s23, 4
        %s1029 = sadd.s32 %s1028, %s24
        %p1030 = scmp.lt.s32.totalorder %s1029, 7
        %s1031 = scalar_select %p1030, %s1029, 7
        %s1032 = scalar_lea.vmem %s5, %s1031
      $region60: #{conv_block_forward.2} parent=47 // pred_fallthru
        _
    $region48: #{conv_block_forward.2} parent=5 // pred_fallthru
      _
  $region6: #{conv_block_forward.2} parent=0 // loop_footer
    %s16 = sadd.s32 1, %s12
  $region7: #{conv_block_forward.2} parent=0 // loop_footer_branch
    %11 = sbr.rel target = $region3
  $region8: #{conv_block_forward.2} parent=0 // loop_exit
    _

</llo_original>
